<compile_context>
chip_gen: v7x
topology: tpu7x:2x2x1
jax: 0.10.0
libtpu: 0.0.40
codegen_flags: <defaults>
</compile_context>

<pallas_src>
import jax
import jax.numpy as jnp
import numpy as np
from jax.experimental import pallas as pl
from jax.experimental.pallas import tpu as pltpu


# ----------------------------------------------------------------------------
# Per-generation VMEM budget & tile helpers
# ----------------------------------------------------------------------------
def _vmem_budget_bytes():
    kind = ""
    try:
        kind = jax.devices()[0].device_kind.lower()
    except Exception:
        pass
    if "v7" in kind:
        return 56 * 1024 * 1024          # v7x: 64 MiB physical, leave headroom
    if "v5" in kind or "v6" in kind:
        return 100 * 1024 * 1024         # 128 MiB parts: raise the scoped cap
    return 48 * 1024 * 1024              # unknown / older parts: conservative


def _pick_tile(dim, candidates):
    """Largest candidate tile that evenly divides `dim`, else the full dim."""
    for c in candidates:
        if dim >= c and dim % c == 0:
            return c
    return dim


def _pick_time_chunk(seq_len, b_blk, hidden, budget):
    """Largest time chunk whose recurrent working set fits ~half the budget."""
    for t in (16, 8, 4, 2, 1):
        if seq_len % t:
            continue
        gx_buf = 2 * t * b_blk * 4 * hidden * 2      # double-buffered bf16 gx
        y_buf = 2 * t * b_blk * hidden * 2           # double-buffered bf16 y
        whh = 4 * hidden * hidden * 2                # single-buffered W_hh^T
        carries = b_blk * hidden * (2 + 4)           # bf16 h + f32 c
        small = 8 * b_blk * hidden * 4               # h0/c0/hT/cT buffers
        if gx_buf + y_buf + whh + carries + small <= budget // 2:
            return t
    return 1


# ----------------------------------------------------------------------------
# Tiled matmul + bias:  out[M, N] = x[M, K] @ wT[K, N] + b[N]
# Weight axis (N) is the OUTER grid axis so each weight/embedding tile is
# DMA'd from HBM exactly once (key for the tied projection against the
# (H, V) embedding).  K (= hidden_dim) stays untiled.
# ----------------------------------------------------------------------------
def _matmul_bias_kernel(x_ref, w_ref, b_ref, o_ref):
    acc = jnp.dot(x_ref[...], w_ref[...], preferred_element_type=jnp.float32)
    o_ref[...] = (acc + b_ref[...]).astype(o_ref.dtype)


def matmul_bias_pallas(x, w_t, b, out_dtype=jnp.float32):
    """x: (M, K), w_t: (K, N) (pre-transposed), b: (N,) -> (M, N)."""
    M, K = x.shape
    K2, N = w_t.shape
    assert K == K2
    x = x.astype(jnp.bfloat16)
    w_t = w_t.astype(jnp.bfloat16)
    b = b.reshape(1, N).astype(jnp.float32)

    budget = _vmem_budget_bytes()
    tm_cands = ((512, 256, 128, 64, 32, 16, 8) if budget >= 96 * 1024 * 1024
                else (256, 128, 64, 32, 16, 8))
    tm = _pick_tile(M, tm_cands)
    tn = _pick_tile(N, (1024, 512, 256, 128))        # lane-dense output tiles
    grid = (N // tn, M // tm)                        # weight axis OUTER

    return pl.pallas_call(
        _matmul_bias_kernel,
        out_shape=jax.ShapeDtypeStruct((M, N), out_dtype),
        grid_spec=pltpu.PrefetchScalarGridSpec(
            num_scalar_prefetch=0,
            grid=grid,
            in_specs=[
                pl.BlockSpec((tm, K), lambda j, i: (i, 0)),
                pl.BlockSpec((K, tn), lambda j, i: (0, j)),   # read once per j
                pl.BlockSpec((1, tn), lambda j, i: (0, j)),
            ],
            out_specs=pl.BlockSpec((tm, tn), lambda j, i: (i, j)),
        ),
        compiler_params=pltpu.CompilerParams(
            dimension_semantics=("parallel", "parallel"),
            vmem_limit_bytes=budget),
    )(x, w_t, b)


# ----------------------------------------------------------------------------
# Recurrent LSTM kernel: only h @ W_hh^T per timestep (input projection is
# hoisted).  Grid = (batch-shards [parallel], time-chunks [arbitrary]); the
# h/c carries and the single-buffered W_hh^T live in VMEM scratch.
# ----------------------------------------------------------------------------
def _sigmoid(x):
    # sigmoid(x) = 0.5 * tanh(x/2) + 0.5 : one EUP op per element (vs
    # exp + reciprocal) and no overflow for strongly negative x.
    return 0.5 * jnp.tanh(0.5 * x) + 0.5


def _lstm_recurrent_kernel(gx_ref, h0_ref, c0_ref, whh_hbm,
                           y_ref, hT_ref, cT_ref,
                           h_sc, c_sc, whh_sc, dma_sem):
    tc = pl.program_id(1)          # time-chunk index (inner, "arbitrary")

    @pl.when(tc == 0)
    def _():
        # W_hh^T: one HBM->VMEM DMA per batch-shard sweep, single-buffered.
        cp = pltpu.make_async_copy(whh_hbm, whh_sc, dma_sem)
        cp.start()
        cp.wait()
        h_sc[...] = h0_ref[...].astype(h_sc.dtype)   # bf16 carry
        c_sc[...] = c0_ref[...]                      # f32 carry

    H = h_sc.shape[-1]
    T = gx_ref.shape[0]
    w_hh = whh_sc[...]             # (H, 4H) bf16, VMEM-resident across the grid

    def step(i, carry):
        h = h_sc[...]              # bf16 — feeds the MXU directly, no cast
        c = c_sc[...]              # f32
        gates = gx_ref[i].astype(jnp.float32) + jnp.dot(
            h, w_hh, preferred_element_type=jnp.float32)        # (B, 4H) f32
        # Gate order pre-permuted offline to [i, f, o, g]:
        # one contiguous 3H-wide sigmoid + one H-wide tanh.
        ifo = _sigmoid(gates[:, 0:3 * H])
        g_g = jnp.tanh(gates[:, 3 * H:4 * H])
        i_g = ifo[:, 0 * H:1 * H]
        f_g = ifo[:, 1 * H:2 * H]
        o_g = ifo[:, 2 * H:3 * H]
        c_new = f_g * c + i_g * g_g
        h_new = (o_g * jnp.tanh(c_new)).astype(jnp.bfloat16)
        h_sc[...] = h_new
        c_sc[...] = c_new
        y_ref[i] = h_new
        return carry

    # Partial unroll (<=8): the steps are serially dependent, deeper unroll
    # only inflates code size / live ranges.
    jax.lax.fori_loop(0, T, step, 0, unroll=min(T, 8))

    @pl.when(tc == pl.num_programs(1) - 1)
    def _():
        hT_ref[...] = h_sc[...].astype(jnp.float32)
        cT_ref[...] = c_sc[...]


def lstm_recurrent_pallas(gates_x, h0, c0, w_hh_t):
    """gates_x: (S, B, 4H) bf16 (hoisted input projection incl. fused bias,
       gate order [i,f,o,g]); h0/c0: (B, H) f32; w_hh_t: (H, 4H) bf16.
       Returns y (S, B, H) bf16, hT (B, H) f32, cT (B, H) f32."""
    S, B, G = gates_x.shape
    H = G // 4
    gates_x = gates_x.astype(jnp.bfloat16)
    w_hh_t = w_hh_t.astype(jnp.bfloat16)

    # Batch split across TensorCores (v7x) — only when each half keeps full
    # 8-row sublane tiles; degenerates to 1 on tiny batches.
    NB = 2 if (B % 2 == 0 and (B // 2) % 8 == 0) else 1
    Bblk = B // NB

    budget = _vmem_budget_bytes()
    T = _pick_time_chunk(S, Bblk, H, budget)

    out_shapes = (
        jax.ShapeDtypeStruct((S, B, H), jnp.bfloat16),
        jax.ShapeDtypeStruct((B, H), jnp.float32),
        jax.ShapeDtypeStruct((B, H), jnp.float32),
    )
    grid_spec = pltpu.PrefetchScalarGridSpec(
        num_scalar_prefetch=0,
        grid=(NB, S // T),
        in_specs=[
            pl.BlockSpec((T, Bblk, 4 * H), lambda nb, t: (t, nb, 0)),   # gx chunk
            pl.BlockSpec((Bblk, H), lambda nb, t: (nb, 0)),             # h0 shard
            pl.BlockSpec((Bblk, H), lambda nb, t: (nb, 0)),             # c0 shard
            pl.BlockSpec(memory_space=pl.ANY),     # W_hh^T stays in HBM; manual DMA
        ],
        out_specs=[
            pl.BlockSpec((T, Bblk, H), lambda nb, t: (t, nb, 0)),
            pl.BlockSpec((Bblk, H), lambda nb, t: (nb, 0)),
            pl.BlockSpec((Bblk, H), lambda nb, t: (nb, 0)),
        ],
        scratch_shapes=[
            pltpu.VMEM((Bblk, H), jnp.bfloat16),    # h carry (bf16)
            pltpu.VMEM((Bblk, H), jnp.float32),     # c carry (f32)
            pltpu.VMEM((H, 4 * H), jnp.bfloat16),   # W_hh^T, single-buffered
            pltpu.SemaphoreType.DMA(()),            # its DMA completion sem
        ],
    )
    return pl.pallas_call(
        _lstm_recurrent_kernel,
        out_shape=out_shapes,
        grid_spec=grid_spec,
        # The time axis carries the h/c recurrence -> must stay "arbitrary";
        # the batch-shard axis is independent -> "parallel" (megacore).
        compiler_params=pltpu.CompilerParams(
            dimension_semantics=("parallel", "arbitrary"),
            vmem_limit_bytes=budget),
    )(gates_x, h0, c0, w_hh_t)


# ----------------------------------------------------------------------------
# One-time parameter preparation (outside jit): gate permutation [i,f,g,o] ->
# [i,f,o,g], bias fusion, transposes, bf16 casts.
# ----------------------------------------------------------------------------
def _permute_gates(w_or_b, hidden_dim):
    H = hidden_dim
    i, f, g, o = (w_or_b[k * H:(k + 1) * H] for k in range(4))
    return jnp.concatenate([i, f, o, g], axis=0)


def prepare_kernel_params(params, hidden_dim):
    H = hidden_dim
    kp = {}
    emb = params["embedding"]                         # (V, H), tied weight
    kp["emb"] = emb.astype(jnp.bfloat16)              # for the gather
    kp["embT"] = emb.T.astype(jnp.bfloat16)           # (H, V) for the projection
    kp["proj_bias"] = params["proj_bias"].astype(jnp.float32)
    for layer in range(3):
        w_ih = _permute_gates(params[f"w_ih_l{layer}"], H)            # (4H, H)
        w_hh = _permute_gates(params[f"w_hh_l{layer}"], H)            # (4H, H)
        bias = _permute_gates(
            params[f"b_ih_l{layer}"] + params[f"b_hh_l{layer}"], H)   # (4H,)
        kp[f"w_ihT_l{layer}"] = w_ih.T.astype(jnp.bfloat16)           # (H, 4H)
        kp[f"w_hhT_l{layer}"] = w_hh.T.astype(jnp.bfloat16)           # (H, 4H)
        kp[f"bias_l{layer}"] = bias.astype(jnp.float32)
    return kp


# ----------------------------------------------------------------------------
# Model wrapper (glue: embedding gather, reshapes, per-layer plumbing)
# ----------------------------------------------------------------------------
def lstm_model_v2_forward(kp, x_ids, hidden):
    """x_ids: (S, B) int32 token ids (seq-major); hidden = (h0, c0), each (3, B, H)."""
    h0_all, c0_all = hidden
    # Embedding lookup (data-dependent gather) stays in plain JAX glue.
    emb = jnp.take(kp["emb"], x_ids, axis=0)          # (S, B, H) bf16
    S, B, H = emb.shape
    V = kp["embT"].shape[1]

    layer_in = emb
    h_finals, c_finals = [], []
    for layer in range(3):
        # Hoisted input projection for ALL timesteps, bias fused, bf16 output
        # (halves the dominant HBM round-trip of the recurrent path).
        gates_x = matmul_bias_pallas(
            layer_in.reshape(S * B, H), kp[f"w_ihT_l{layer}"],
            kp[f"bias_l{layer}"], out_dtype=jnp.bfloat16).reshape(S, B, 4 * H)
        y, hT, cT = lstm_recurrent_pallas(
            gates_x, h0_all[layer], c0_all[layer], kp[f"w_hhT_l{layer}"])
        layer_in = y              # dropout == identity (eval mode)
        h_finals.append(hT)
        c_finals.append(cT)

    # Tied output projection against the pre-transposed (H, V) embedding;
    # the vocab axis is the outer grid axis so the embedding streams once.
    logits = matmul_bias_pallas(
        layer_in.reshape(S * B, H), kp["embT"], kp["proj_bias"],
        out_dtype=jnp.float32).reshape(S, B, V)
    return logits, (jnp.stack(h_finals, 0), jnp.stack(c_finals, 0))


# ----------------------------------------------------------------------------
# Pure-JAX reference (full f32, HIGHEST precision) for the correctness check
# ----------------------------------------------------------------------------
def reference_forward(params, x_ids, hidden):
    h0_all, c0_all = hidden
    w_emb = params["embedding"]
    emb = jnp.take(w_emb, x_ids, axis=0)
    HIGH = jax.lax.Precision.HIGHEST

    layer_in = emb
    h_finals, c_finals = [], []
    for layer in range(3):
        w_ih = params[f"w_ih_l{layer}"]
        w_hh = params[f"w_hh_l{layer}"]
        b = params[f"b_ih_l{layer}"] + params[f"b_hh_l{layer}"]
        H = w_hh.shape[1]

        def step(carry, x_t):
            h, c = carry
            gates = (jnp.dot(x_t, w_ih.T, precision=HIGH)
                     + jnp.dot(h, w_hh.T, precision=HIGH) + b)
            i_g = jax.nn.sigmoid(gates[:, 0 * H:1 * H])
            f_g = jax.nn.sigmoid(gates[:, 1 * H:2 * H])
            g_g = jnp.tanh(gates[:, 2 * H:3 * H])
            o_g = jax.nn.sigmoid(gates[:, 3 * H:4 * H])
            c = f_g * c + i_g * g_g
            h = o_g * jnp.tanh(c)
            return (h, c), h

        (hT, cT), ys = jax.lax.scan(step, (h0_all[layer], c0_all[layer]),
                                    layer_in)
        layer_in = ys
        h_finals.append(hT)
        c_finals.append(cT)

    logits = (jnp.einsum("sbh,vh->sbv", layer_in, w_emb, precision=HIGH)
              + params["proj_bias"])
    return logits, (jnp.stack(h_finals), jnp.stack(c_finals))


# ----------------------------------------------------------------------------
# Deterministic parameter construction (matches the PyTorch module's init)
# ----------------------------------------------------------------------------
def make_params(key, word_count, hidden_dim):
    keys = jax.random.split(key, 16)
    params = {}
    params["embedding"] = jax.random.uniform(
        keys[0], (word_count, hidden_dim), jnp.float32, -0.1, 0.1)
    params["proj_bias"] = jnp.zeros((word_count,), jnp.float32)
    k = 1.0 / np.sqrt(hidden_dim)
    ki = 1
    for layer in range(3):
        params[f"w_ih_l{layer}"] = jax.random.uniform(
            keys[ki], (4 * hidden_dim, hidden_dim), jnp.float32, -k, k); ki += 1
        params[f"w_hh_l{layer}"] = jax.random.uniform(
            keys[ki], (4 * hidden_dim, hidden_dim), jnp.float32, -k, k); ki += 1
        params[f"b_ih_l{layer}"] = jax.random.uniform(
            keys[ki], (4 * hidden_dim,), jnp.float32, -k, k); ki += 1
        params[f"b_hh_l{layer}"] = jax.random.uniform(
            keys[ki], (4 * hidden_dim,), jnp.float32, -k, k); ki += 1
    return params


if __name__ == "__main__":
    WORD_COUNT = 256
    HIDDEN = 32
    SEQ = 8
    BATCH = 16          # multiple of 16: exercises the batch-split grid axis

    root = jax.random.PRNGKey(0)
    k_params, k_ids = jax.random.split(root)
    params = make_params(k_params, WORD_COUNT, HIDDEN)
    kernel_params = prepare_kernel_params(params, HIDDEN)

    x_ids = jax.random.randint(k_ids, (SEQ, BATCH), 0, WORD_COUNT, jnp.int32)
    h0 = jnp.zeros((3, BATCH, HIDDEN), jnp.float32)   # init_hidden(bsz)
    c0 = jnp.zeros((3, BATCH, HIDDEN), jnp.float32)

    fwd = jax.jit(lstm_model_v2_forward)
    logits, (h_n, c_n) = fwd(kernel_params, x_ids, (h0, c0))
    jax.block_until_ready((logits, h_n, c_n))

    # Tolerance reflects bf16 weights / activations / gates_x on the MXU path
    # (matmul accumulation, gate math and the cell state stay f32); reference
    # is full f32 HIGHEST precision.
    ref_logits, (ref_h, ref_c) = reference_forward(params, x_ids, (h0, c0))
    np.testing.assert_allclose(np.asarray(logits), np.asarray(ref_logits),
                               rtol=2e-2, atol=2e-2)
    np.testing.assert_allclose(np.asarray(h_n), np.asarray(ref_h),
                               rtol=2e-2, atol=2e-2)
    np.testing.assert_allclose(np.asarray(c_n), np.asarray(ref_c),
                               rtol=2e-2, atol=2e-2)

    assert logits.shape == (SEQ, BATCH, WORD_COUNT)
    assert h_n.shape == (3, BATCH, HIDDEN) and c_n.shape == (3, BATCH, HIDDEN)
    print("KERNEL_OK")
</pallas_src>

<mosaic_0001>
module attributes {stable_mosaic.version = 11 : i64} {
  func.func @_matmul_bias_kernel(%arg0: i32, %arg1: i32, %arg2: memref<128x32xbf16, #tpu.memory_space<vmem>>, %arg3: memref<32x128xbf16, #tpu.memory_space<vmem>>, %arg4: memref<1x128xf32, #tpu.memory_space<vmem>>, %arg5: memref<128x128xbf16, #tpu.memory_space<vmem>>) attributes {dimension_semantics = [#tpu.dimension_semantics<parallel>, #tpu.dimension_semantics<parallel>], iteration_bounds = array<i64: 1, 1>, scalar_prefetch = 0 : i64, scratch_operands = 0 : i64, tpu.core_type = #tpu.core_type<tc>, window_params = [{transform_indices = @transform_0, window_bounds = array<i64: 128, 32>}, {transform_indices = @transform_1, window_bounds = array<i64: 32, 128>}, {transform_indices = @transform_2, window_bounds = array<i64: 1, 128>}, {transform_indices = @transform_3, window_bounds = array<i64: 128, 128>}]} {
    %c0 = arith.constant 0 : index
    %c0_0 = arith.constant 0 : index
    %0 = vector.load %arg2[%c0, %c0_0] : memref<128x32xbf16, #tpu.memory_space<vmem>>, vector<128x32xbf16>
    %c0_1 = arith.constant 0 : index
    %c0_2 = arith.constant 0 : index
    %1 = vector.load %arg3[%c0_1, %c0_2] : memref<32x128xbf16, #tpu.memory_space<vmem>>, vector<32x128xbf16>
    %cst = arith.constant dense<0.000000e+00> : vector<128x128xf32>
    %2 = tpu.matmul %0, %1, %cst {dimension_numbers = #tpu.dot_dimension_numbers<[1], [0], [0], [1], [0, 0, 1, 1], [], []>} : vector<128x32xbf16>, vector<32x128xbf16>, vector<128x128xf32> -> vector<128x128xf32>
    %c0_3 = arith.constant 0 : index
    %c0_4 = arith.constant 0 : index
    %3 = vector.load %arg4[%c0_3, %c0_4] : memref<1x128xf32, #tpu.memory_space<vmem>>, vector<1x128xf32>
    %4 = vector.broadcast %3 : vector<1x128xf32> to vector<128x128xf32>
    %5 = arith.addf %2, %4 : vector<128x128xf32>
    %6 = arith.truncf %5 : vector<128x128xf32> to vector<128x128xbf16>
    %c0_5 = arith.constant 0 : index
    %c0_6 = arith.constant 0 : index
    %7 = vector.load %arg5[%c0_5, %c0_6] : memref<128x128xbf16, #tpu.memory_space<vmem>>, vector<128x128xbf16>
    tpu.vector_store %arg5[%c0_5, %c0_6], %6 {strides = array<i32>} : memref<128x128xbf16, #tpu.memory_space<vmem>>, vector<128x128xbf16>,
    return
  }
  func.func @transform_0(%arg0: i32, %arg1: i32) -> (i32, i32) {
    %c0_i32 = arith.constant 0 : i32
    %c0_i32_0 = arith.constant 0 : i32
    return %arg1, %c0_i32 : i32, i32
  }
  func.func @transform_1(%arg0: i32, %arg1: i32) -> (i32, i32) {
    %c0_i32 = arith.constant 0 : i32
    %c0_i32_0 = arith.constant 0 : i32
    return %c0_i32, %arg0 : i32, i32
  }
  func.func @transform_2(%arg0: i32, %arg1: i32) -> (i32, i32) {
    %c0_i32 = arith.constant 0 : i32
    %c0_i32_0 = arith.constant 0 : i32
    return %c0_i32, %arg0 : i32, i32
  }
  func.func @transform_3(%arg0: i32, %arg1: i32) -> (i32, i32) {
    %c0_i32 = arith.constant 0 : i32
    return %arg1, %arg0 : i32, i32
  }
}

module attributes {stable_mosaic.version = 11 : i64} {
  func.func @_matmul_bias_kernel(%arg0: i32, %arg1: i32, %arg2: memref<128x32xbf16, #tpu.memory_space<vmem>>, %arg3: memref<32x256xbf16, #tpu.memory_space<vmem>>, %arg4: memref<1x256xf32, #tpu.memory_space<vmem>>, %arg5: memref<128x256xf32, #tpu.memory_space<vmem>>) attributes {dimension_semantics = [#tpu.dimension_semantics<parallel>, #tpu.dimension_semantics<parallel>], iteration_bounds = array<i64: 1, 1>, scalar_prefetch = 0 : i64, scratch_operands = 0 : i64, tpu.core_type = #tpu.core_type<tc>, window_params = [{transform_indices = @transform_0, window_bounds = array<i64: 128, 32>}, {transform_indices = @transform_1, window_bounds = array<i64: 32, 256>}, {transform_indices = @transform_2, window_bounds = array<i64: 1, 256>}, {transform_indices = @transform_3, window_bounds = array<i64: 128, 256>}]} {
    %c0 = arith.constant 0 : index
    %c0_0 = arith.constant 0 : index
    %0 = vector.load %arg2[%c0, %c0_0] : memref<128x32xbf16, #tpu.memory_space<vmem>>, vector<128x32xbf16>
    %c0_1 = arith.constant 0 : index
    %c0_2 = arith.constant 0 : index
    %1 = vector.load %arg3[%c0_1, %c0_2] : memref<32x256xbf16, #tpu.memory_space<vmem>>, vector<32x256xbf16>
    %cst = arith.constant dense<0.000000e+00> : vector<128x256xf32>
    %2 = tpu.matmul %0, %1, %cst {dimension_numbers = #tpu.dot_dimension_numbers<[1], [0], [0], [1], [0, 0, 1, 1], [], []>} : vector<128x32xbf16>, vector<32x256xbf16>, vector<128x256xf32> -> vector<128x256xf32>
    %c0_3 = arith.constant 0 : index
    %c0_4 = arith.constant 0 : index
    %3 = vector.load %arg4[%c0_3, %c0_4] : memref<1x256xf32, #tpu.memory_space<vmem>>, vector<1x256xf32>
    %4 = vector.broadcast %3 : vector<1x256xf32> to vector<128x256xf32>
    %5 = arith.addf %2, %4 : vector<128x256xf32>
    %c0_5 = arith.constant 0 : index
    %c0_6 = arith.constant 0 : index
    %6 = vector.load %arg5[%c0_5, %c0_6] : memref<128x256xf32, #tpu.memory_space<vmem>>, vector<128x256xf32>
    tpu.vector_store %arg5[%c0_5, %c0_6], %5 {strides = array<i32>} : memref<128x256xf32, #tpu.memory_space<vmem>>, vector<128x256xf32>,
    return
  }
  func.func @transform_0(%arg0: i32, %arg1: i32) -> (i32, i32) {
    %c0_i32 = arith.constant 0 : i32
    %c0_i32_0 = arith.constant 0 : i32
    return %arg1, %c0_i32 : i32, i32
  }
  func.func @transform_1(%arg0: i32, %arg1: i32) -> (i32, i32) {
    %c0_i32 = arith.constant 0 : i32
    %c0_i32_0 = arith.constant 0 : i32
    return %c0_i32, %arg0 : i32, i32
  }
  func.func @transform_2(%arg0: i32, %arg1: i32) -> (i32, i32) {
    %c0_i32 = arith.constant 0 : i32
    %c0_i32_0 = arith.constant 0 : i32
    return %c0_i32, %arg0 : i32, i32
  }
  func.func @transform_3(%arg0: i32, %arg1: i32) -> (i32, i32) {
    %c0_i32 = arith.constant 0 : i32
    return %arg1, %arg0 : i32, i32
  }
}

module attributes {stable_mosaic.version = 11 : i64} {
  func.func @_lstm_recurrent_kernel(%arg0: i32, %arg1: i32, %arg2: memref<8x8x128xbf16, #tpu.memory_space<vmem>>, %arg3: memref<8x32xf32, #tpu.memory_space<vmem>>, %arg4: memref<8x32xf32, #tpu.memory_space<vmem>>, %arg5: memref<32x128xbf16, #tpu.memory_space<any>>, %arg6: memref<8x8x32xbf16, #tpu.memory_space<vmem>>, %arg7: memref<8x32xf32, #tpu.memory_space<vmem>>, %arg8: memref<8x32xf32, #tpu.memory_space<vmem>>, %arg9: memref<8x32xbf16, #tpu.memory_space<vmem>>, %arg10: memref<8x32xf32, #tpu.memory_space<vmem>>, %arg11: memref<32x128xbf16, #tpu.memory_space<vmem>>, %arg12: memref<!tpu.dma_semaphore, #tpu.memory_space<semaphore_mem>>) attributes {dimension_semantics = [#tpu.dimension_semantics<parallel>, #tpu.dimension_semantics<arbitrary>], iteration_bounds = array<i64: 2, 1>, scalar_prefetch = 0 : i64, scratch_operands = 4 : i64, tpu.core_type = #tpu.core_type<tc>, window_params = [{transform_indices = @transform_0, window_bounds = array<i64: 8, 8, 128>}, {transform_indices = @transform_1, window_bounds = array<i64: 8, 32>}, {transform_indices = @transform_2, window_bounds = array<i64: 8, 32>}, {}, {transform_indices = @transform_4, window_bounds = array<i64: 8, 8, 32>}, {transform_indices = @transform_5, window_bounds = array<i64: 8, 32>}, {transform_indices = @transform_6, window_bounds = array<i64: 8, 32>}]} {
    %c0_i32 = arith.constant 0 : i32
    %0 = arith.cmpi eq, %arg1, %c0_i32 : i32
    %1 = arith.extui %0 : i1 to i32
    %c0_i32_0 = arith.constant 0 : i32
    %2 = arith.cmpi ne, %1, %c0_i32_0 : i32
    scf.if %2 {
      tpu.enqueue_dma source(%arg5 : memref<32x128xbf16, #tpu.memory_space<any>>) target(%arg11 : memref<32x128xbf16, #tpu.memory_space<vmem>>) target_semaphore(%arg12 : memref<!tpu.dma_semaphore, #tpu.memory_space<semaphore_mem>>)
      tpu.wait_dma2 semaphore(%arg12 : memref<!tpu.dma_semaphore, #tpu.memory_space<semaphore_mem>>) src(%arg5 : memref<32x128xbf16, #tpu.memory_space<any>>) dst(%arg11 : memref<32x128xbf16, #tpu.memory_space<vmem>>)
      %c0_132 = arith.constant 0 : index
      %c0_133 = arith.constant 0 : index
      %271 = vector.load %arg3[%c0_132, %c0_133] : memref<8x32xf32, #tpu.memory_space<vmem>>, vector<8x32xf32>
      %272 = arith.truncf %271 : vector<8x32xf32> to vector<8x32xbf16>
      %c0_134 = arith.constant 0 : index
      %c0_135 = arith.constant 0 : index
      %273 = vector.load %arg9[%c0_134, %c0_135] : memref<8x32xbf16, #tpu.memory_space<vmem>>, vector<8x32xbf16>
      tpu.vector_store %arg9[%c0_134, %c0_135], %272 {strides = array<i32>} : memref<8x32xbf16, #tpu.memory_space<vmem>>, vector<8x32xbf16>,
      %c0_136 = arith.constant 0 : index
      %c0_137 = arith.constant 0 : index
      %274 = vector.load %arg4[%c0_136, %c0_137] : memref<8x32xf32, #tpu.memory_space<vmem>>, vector<8x32xf32>
      %c0_138 = arith.constant 0 : index
      %c0_139 = arith.constant 0 : index
      %275 = vector.load %arg10[%c0_138, %c0_139] : memref<8x32xf32, #tpu.memory_space<vmem>>, vector<8x32xf32>
      tpu.vector_store %arg10[%c0_138, %c0_139], %274 {strides = array<i32>} : memref<8x32xf32, #tpu.memory_space<vmem>>, vector<8x32xf32>,
    } else {
    }
    %c0 = arith.constant 0 : index
    %c0_1 = arith.constant 0 : index
    %3 = vector.load %arg11[%c0, %c0_1] : memref<32x128xbf16, #tpu.memory_space<vmem>>, vector<32x128xbf16>
    %c0_i32_2 = arith.constant 0 : i32
    %c0_3 = arith.constant 0 : index
    %c0_4 = arith.constant 0 : index
    %4 = vector.load %arg9[%c0_3, %c0_4] : memref<8x32xbf16, #tpu.memory_space<vmem>>, vector<8x32xbf16>
    %c0_5 = arith.constant 0 : index
    %c0_6 = arith.constant 0 : index
    %5 = vector.load %arg10[%c0_5, %c0_6] : memref<8x32xf32, #tpu.memory_space<vmem>>, vector<8x32xf32>
    %6 = arith.index_cast %c0_i32_2 : i32 to index
    %c0_7 = arith.constant 0 : index
    %c0_8 = arith.constant 0 : index
    %7 = vector.load %arg2[%6, %c0_7, %c0_8] : memref<8x8x128xbf16, #tpu.memory_space<vmem>>, vector<1x8x128xbf16>
    %8 = vector.shape_cast %7 : vector<1x8x128xbf16> to vector<8x128xbf16>
    %9 = arith.extf %8 : vector<8x128xbf16> to vector<8x128xf32>
    %cst = arith.constant dense<0.000000e+00> : vector<8x128xf32>
    %10 = tpu.matmul %4, %3, %cst {dimension_numbers = #tpu.dot_dimension_numbers<[1], [0], [0], [1], [0, 0, 1, 1], [], []>} : vector<8x32xbf16>, vector<32x128xbf16>, vector<8x128xf32> -> vector<8x128xf32>
    %11 = arith.addf %9, %10 : vector<8x128xf32>
    %12 = vector.extract_strided_slice %11 {offsets = [0, 0], sizes = [8, 96], strides = [1, 1]} : vector<8x128xf32> to vector<8x96xf32>
    %cst_9 = arith.constant 5.000000e-01 : f32
    %13 = vector.broadcast %cst_9 : f32 to vector<8x96xf32>
    %14 = arith.mulf %13, %12 : vector<8x96xf32>
    %15 = math.tanh %14 : vector<8x96xf32>
    %cst_10 = arith.constant 5.000000e-01 : f32
    %16 = vector.broadcast %cst_10 : f32 to vector<8x96xf32>
    %17 = arith.mulf %16, %15 : vector<8x96xf32>
    %cst_11 = arith.constant 5.000000e-01 : f32
    %18 = vector.broadcast %cst_11 : f32 to vector<8x96xf32>
    %19 = arith.addf %17, %18 : vector<8x96xf32>
    %20 = vector.extract_strided_slice %11 {offsets = [0, 96], sizes = [8, 32], strides = [1, 1]} : vector<8x128xf32> to vector<8x32xf32>
    %21 = math.tanh %20 : vector<8x32xf32>
    %22 = vector.extract_strided_slice %19 {offsets = [0, 0], sizes = [8, 32], strides = [1, 1]} : vector<8x96xf32> to vector<8x32xf32>
    %23 = vector.extract_strided_slice %19 {offsets = [0, 32], sizes = [8, 32], strides = [1, 1]} : vector<8x96xf32> to vector<8x32xf32>
    %24 = vector.extract_strided_slice %19 {offsets = [0, 64], sizes = [8, 32], strides = [1, 1]} : vector<8x96xf32> to vector<8x32xf32>
    %25 = arith.mulf %23, %5 : vector<8x32xf32>
    %26 = arith.mulf %22, %21 : vector<8x32xf32>
    %27 = arith.addf %25, %26 : vector<8x32xf32>
    %28 = math.tanh %27 : vector<8x32xf32>
    %29 = arith.mulf %24, %28 : vector<8x32xf32>
    %30 = arith.truncf %29 : vector<8x32xf32> to vector<8x32xbf16>
    %c0_12 = arith.constant 0 : index
    %c0_13 = arith.constant 0 : index
    %31 = vector.load %arg9[%c0_12, %c0_13] : memref<8x32xbf16, #tpu.memory_space<vmem>>, vector<8x32xbf16>
    tpu.vector_store %arg9[%c0_12, %c0_13], %30 {strides = array<i32>} : memref<8x32xbf16, #tpu.memory_space<vmem>>, vector<8x32xbf16>,
    %c0_14 = arith.constant 0 : index
    %c0_15 = arith.constant 0 : index
    %32 = vector.load %arg10[%c0_14, %c0_15] : memref<8x32xf32, #tpu.memory_space<vmem>>, vector<8x32xf32>
    tpu.vector_store %arg10[%c0_14, %c0_15], %27 {strides = array<i32>} : memref<8x32xf32, #tpu.memory_space<vmem>>, vector<8x32xf32>,
    %33 = arith.index_cast %c0_i32_2 : i32 to index
    %c0_16 = arith.constant 0 : index
    %c0_17 = arith.constant 0 : index
    %34 = vector.load %arg6[%33, %c0_16, %c0_17] : memref<8x8x32xbf16, #tpu.memory_space<vmem>>, vector<1x8x32xbf16>
    %35 = vector.shape_cast %34 : vector<1x8x32xbf16> to vector<8x32xbf16>
    %36 = vector.shape_cast %30 : vector<8x32xbf16> to vector<1x8x32xbf16>
    tpu.vector_store %arg6[%33, %c0_16, %c0_17], %36 {strides = array<i32>} : memref<8x8x32xbf16, #tpu.memory_space<vmem>>, vector<1x8x32xbf16>,
    %c1_i32 = arith.constant 1 : i32
    %c0_18 = arith.constant 0 : index
    %c0_19 = arith.constant 0 : index
    %37 = vector.load %arg9[%c0_18, %c0_19] : memref<8x32xbf16, #tpu.memory_space<vmem>>, vector<8x32xbf16>
    %c0_20 = arith.constant 0 : index
    %c0_21 = arith.constant 0 : index
    %38 = vector.load %arg10[%c0_20, %c0_21] : memref<8x32xf32, #tpu.memory_space<vmem>>, vector<8x32xf32>
    %39 = arith.index_cast %c1_i32 : i32 to index
    %c0_22 = arith.constant 0 : index
    %c0_23 = arith.constant 0 : index
    %40 = vector.load %arg2[%39, %c0_22, %c0_23] : memref<8x8x128xbf16, #tpu.memory_space<vmem>>, vector<1x8x128xbf16>
    %41 = vector.shape_cast %40 : vector<1x8x128xbf16> to vector<8x128xbf16>
    %42 = arith.extf %41 : vector<8x128xbf16> to vector<8x128xf32>
    %cst_24 = arith.constant dense<0.000000e+00> : vector<8x128xf32>
    %43 = tpu.matmul %37, %3, %cst_24 {dimension_numbers = #tpu.dot_dimension_numbers<[1], [0], [0], [1], [0, 0, 1, 1], [], []>} : vector<8x32xbf16>, vector<32x128xbf16>, vector<8x128xf32> -> vector<8x128xf32>
    %44 = arith.addf %42, %43 : vector<8x128xf32>
    %45 = vector.extract_strided_slice %44 {offsets = [0, 0], sizes = [8, 96], strides = [1, 1]} : vector<8x128xf32> to vector<8x96xf32>
    %cst_25 = arith.constant 5.000000e-01 : f32
    %46 = vector.broadcast %cst_25 : f32 to vector<8x96xf32>
    %47 = arith.mulf %46, %45 : vector<8x96xf32>
    %48 = math.tanh %47 : vector<8x96xf32>
    %cst_26 = arith.constant 5.000000e-01 : f32
    %49 = vector.broadcast %cst_26 : f32 to vector<8x96xf32>
    %50 = arith.mulf %49, %48 : vector<8x96xf32>
    %cst_27 = arith.constant 5.000000e-01 : f32
    %51 = vector.broadcast %cst_27 : f32 to vector<8x96xf32>
    %52 = arith.addf %50, %51 : vector<8x96xf32>
    %53 = vector.extract_strided_slice %44 {offsets = [0, 96], sizes = [8, 32], strides = [1, 1]} : vector<8x128xf32> to vector<8x32xf32>
    %54 = math.tanh %53 : vector<8x32xf32>
    %55 = vector.extract_strided_slice %52 {offsets = [0, 0], sizes = [8, 32], strides = [1, 1]} : vector<8x96xf32> to vector<8x32xf32>
    %56 = vector.extract_strided_slice %52 {offsets = [0, 32], sizes = [8, 32], strides = [1, 1]} : vector<8x96xf32> to vector<8x32xf32>
    %57 = vector.extract_strided_slice %52 {offsets = [0, 64], sizes = [8, 32], strides = [1, 1]} : vector<8x96xf32> to vector<8x32xf32>
    %58 = arith.mulf %56, %38 : vector<8x32xf32>
    %59 = arith.mulf %55, %54 : vector<8x32xf32>
    %60 = arith.addf %58, %59 : vector<8x32xf32>
    %61 = math.tanh %60 : vector<8x32xf32>
    %62 = arith.mulf %57, %61 : vector<8x32xf32>
    %63 = arith.truncf %62 : vector<8x32xf32> to vector<8x32xbf16>
    %c0_28 = arith.constant 0 : index
    %c0_29 = arith.constant 0 : index
    %64 = vector.load %arg9[%c0_28, %c0_29] : memref<8x32xbf16, #tpu.memory_space<vmem>>, vector<8x32xbf16>
    tpu.vector_store %arg9[%c0_28, %c0_29], %63 {strides = array<i32>} : memref<8x32xbf16, #tpu.memory_space<vmem>>, vector<8x32xbf16>,
    %c0_30 = arith.constant 0 : index
    %c0_31 = arith.constant 0 : index
    %65 = vector.load %arg10[%c0_30, %c0_31] : memref<8x32xf32, #tpu.memory_space<vmem>>, vector<8x32xf32>
    tpu.vector_store %arg10[%c0_30, %c0_31], %60 {strides = array<i32>} : memref<8x32xf32, #tpu.memory_space<vmem>>, vector<8x32xf32>,
    %66 = arith.index_cast %c1_i32 : i32 to index
    %c0_32 = arith.constant 0 : index
    %c0_33 = arith.constant 0 : index
    %67 = vector.load %arg6[%66, %c0_32, %c0_33] : memref<8x8x32xbf16, #tpu.memory_space<vmem>>, vector<1x8x32xbf16>
    %68 = vector.shape_cast %67 : vector<1x8x32xbf16> to vector<8x32xbf16>
    %69 = vector.shape_cast %63 : vector<8x32xbf16> to vector<1x8x32xbf16>
    tpu.vector_store %arg6[%66, %c0_32, %c0_33], %69 {strides = array<i32>} : memref<8x8x32xbf16, #tpu.memory_space<vmem>>, vector<1x8x32xbf16>,
    %c2_i32 = arith.constant 2 : i32
    %c0_34 = arith.constant 0 : index
    %c0_35 = arith.constant 0 : index
    %70 = vector.load %arg9[%c0_34, %c0_35] : memref<8x32xbf16, #tpu.memory_space<vmem>>, vector<8x32xbf16>
    %c0_36 = arith.constant 0 : index
    %c0_37 = arith.constant 0 : index
    %71 = vector.load %arg10[%c0_36, %c0_37] : memref<8x32xf32, #tpu.memory_space<vmem>>, vector<8x32xf32>
    %72 = arith.index_cast %c2_i32 : i32 to index
    %c0_38 = arith.constant 0 : index
    %c0_39 = arith.constant 0 : index
    %73 = vector.load %arg2[%72, %c0_38, %c0_39] : memref<8x8x128xbf16, #tpu.memory_space<vmem>>, vector<1x8x128xbf16>
    %74 = vector.shape_cast %73 : vector<1x8x128xbf16> to vector<8x128xbf16>
    %75 = arith.extf %74 : vector<8x128xbf16> to vector<8x128xf32>
    %cst_40 = arith.constant dense<0.000000e+00> : vector<8x128xf32>
    %76 = tpu.matmul %70, %3, %cst_40 {dimension_numbers = #tpu.dot_dimension_numbers<[1], [0], [0], [1], [0, 0, 1, 1], [], []>} : vector<8x32xbf16>, vector<32x128xbf16>, vector<8x128xf32> -> vector<8x128xf32>
    %77 = arith.addf %75, %76 : vector<8x128xf32>
    %78 = vector.extract_strided_slice %77 {offsets = [0, 0], sizes = [8, 96], strides = [1, 1]} : vector<8x128xf32> to vector<8x96xf32>
    %cst_41 = arith.constant 5.000000e-01 : f32
    %79 = vector.broadcast %cst_41 : f32 to vector<8x96xf32>
    %80 = arith.mulf %79, %78 : vector<8x96xf32>
    %81 = math.tanh %80 : vector<8x96xf32>
    %cst_42 = arith.constant 5.000000e-01 : f32
    %82 = vector.broadcast %cst_42 : f32 to vector<8x96xf32>
    %83 = arith.mulf %82, %81 : vector<8x96xf32>
    %cst_43 = arith.constant 5.000000e-01 : f32
    %84 = vector.broadcast %cst_43 : f32 to vector<8x96xf32>
    %85 = arith.addf %83, %84 : vector<8x96xf32>
    %86 = vector.extract_strided_slice %77 {offsets = [0, 96], sizes = [8, 32], strides = [1, 1]} : vector<8x128xf32> to vector<8x32xf32>
    %87 = math.tanh %86 : vector<8x32xf32>
    %88 = vector.extract_strided_slice %85 {offsets = [0, 0], sizes = [8, 32], strides = [1, 1]} : vector<8x96xf32> to vector<8x32xf32>
    %89 = vector.extract_strided_slice %85 {offsets = [0, 32], sizes = [8, 32], strides = [1, 1]} : vector<8x96xf32> to vector<8x32xf32>
    %90 = vector.extract_strided_slice %85 {offsets = [0, 64], sizes = [8, 32], strides = [1, 1]} : vector<8x96xf32> to vector<8x32xf32>
    %91 = arith.mulf %89, %71 : vector<8x32xf32>
    %92 = arith.mulf %88, %87 : vector<8x32xf32>
    %93 = arith.addf %91, %92 : vector<8x32xf32>
    %94 = math.tanh %93 : vector<8x32xf32>
    %95 = arith.mulf %90, %94 : vector<8x32xf32>
    %96 = arith.truncf %95 : vector<8x32xf32> to vector<8x32xbf16>
    %c0_44 = arith.constant 0 : index
    %c0_45 = arith.constant 0 : index
    %97 = vector.load %arg9[%c0_44, %c0_45] : memref<8x32xbf16, #tpu.memory_space<vmem>>, vector<8x32xbf16>
    tpu.vector_store %arg9[%c0_44, %c0_45], %96 {strides = array<i32>} : memref<8x32xbf16, #tpu.memory_space<vmem>>, vector<8x32xbf16>,
    %c0_46 = arith.constant 0 : index
    %c0_47 = arith.constant 0 : index
    %98 = vector.load %arg10[%c0_46, %c0_47] : memref<8x32xf32, #tpu.memory_space<vmem>>, vector<8x32xf32>
    tpu.vector_store %arg10[%c0_46, %c0_47], %93 {strides = array<i32>} : memref<8x32xf32, #tpu.memory_space<vmem>>, vector<8x32xf32>,
    %99 = arith.index_cast %c2_i32 : i32 to index
    %c0_48 = arith.constant 0 : index
    %c0_49 = arith.constant 0 : index
    %100 = vector.load %arg6[%99, %c0_48, %c0_49] : memref<8x8x32xbf16, #tpu.memory_space<vmem>>, vector<1x8x32xbf16>
    %101 = vector.shape_cast %100 : vector<1x8x32xbf16> to vector<8x32xbf16>
    %102 = vector.shape_cast %96 : vector<8x32xbf16> to vector<1x8x32xbf16>
    tpu.vector_store %arg6[%99, %c0_48, %c0_49], %102 {strides = array<i32>} : memref<8x8x32xbf16, #tpu.memory_space<vmem>>, vector<1x8x32xbf16>,
    %c3_i32 = arith.constant 3 : i32
    %c0_50 = arith.constant 0 : index
    %c0_51 = arith.constant 0 : index
    %103 = vector.load %arg9[%c0_50, %c0_51] : memref<8x32xbf16, #tpu.memory_space<vmem>>, vector<8x32xbf16>
    %c0_52 = arith.constant 0 : index
    %c0_53 = arith.constant 0 : index
    %104 = vector.load %arg10[%c0_52, %c0_53] : memref<8x32xf32, #tpu.memory_space<vmem>>, vector<8x32xf32>
    %105 = arith.index_cast %c3_i32 : i32 to index
    %c0_54 = arith.constant 0 : index
    %c0_55 = arith.constant 0 : index
    %106 = vector.load %arg2[%105, %c0_54, %c0_55] : memref<8x8x128xbf16, #tpu.memory_space<vmem>>, vector<1x8x128xbf16>
    %107 = vector.shape_cast %106 : vector<1x8x128xbf16> to vector<8x128xbf16>
    %108 = arith.extf %107 : vector<8x128xbf16> to vector<8x128xf32>
    %cst_56 = arith.constant dense<0.000000e+00> : vector<8x128xf32>
    %109 = tpu.matmul %103, %3, %cst_56 {dimension_numbers = #tpu.dot_dimension_numbers<[1], [0], [0], [1], [0, 0, 1, 1], [], []>} : vector<8x32xbf16>, vector<32x128xbf16>, vector<8x128xf32> -> vector<8x128xf32>
    %110 = arith.addf %108, %109 : vector<8x128xf32>
    %111 = vector.extract_strided_slice %110 {offsets = [0, 0], sizes = [8, 96], strides = [1, 1]} : vector<8x128xf32> to vector<8x96xf32>
    %cst_57 = arith.constant 5.000000e-01 : f32
    %112 = vector.broadcast %cst_57 : f32 to vector<8x96xf32>
    %113 = arith.mulf %112, %111 : vector<8x96xf32>
    %114 = math.tanh %113 : vector<8x96xf32>
    %cst_58 = arith.constant 5.000000e-01 : f32
    %115 = vector.broadcast %cst_58 : f32 to vector<8x96xf32>
    %116 = arith.mulf %115, %114 : vector<8x96xf32>
    %cst_59 = arith.constant 5.000000e-01 : f32
    %117 = vector.broadcast %cst_59 : f32 to vector<8x96xf32>
    %118 = arith.addf %116, %117 : vector<8x96xf32>
    %119 = vector.extract_strided_slice %110 {offsets = [0, 96], sizes = [8, 32], strides = [1, 1]} : vector<8x128xf32> to vector<8x32xf32>
    %120 = math.tanh %119 : vector<8x32xf32>
    %121 = vector.extract_strided_slice %118 {offsets = [0, 0], sizes = [8, 32], strides = [1, 1]} : vector<8x96xf32> to vector<8x32xf32>
    %122 = vector.extract_strided_slice %118 {offsets = [0, 32], sizes = [8, 32], strides = [1, 1]} : vector<8x96xf32> to vector<8x32xf32>
    %123 = vector.extract_strided_slice %118 {offsets = [0, 64], sizes = [8, 32], strides = [1, 1]} : vector<8x96xf32> to vector<8x32xf32>
    %124 = arith.mulf %122, %104 : vector<8x32xf32>
    %125 = arith.mulf %121, %120 : vector<8x32xf32>
    %126 = arith.addf %124, %125 : vector<8x32xf32>
    %127 = math.tanh %126 : vector<8x32xf32>
    %128 = arith.mulf %123, %127 : vector<8x32xf32>
    %129 = arith.truncf %128 : vector<8x32xf32> to vector<8x32xbf16>
    %c0_60 = arith.constant 0 : index
    %c0_61 = arith.constant 0 : index
    %130 = vector.load %arg9[%c0_60, %c0_61] : memref<8x32xbf16, #tpu.memory_space<vmem>>, vector<8x32xbf16>
    tpu.vector_store %arg9[%c0_60, %c0_61], %129 {strides = array<i32>} : memref<8x32xbf16, #tpu.memory_space<vmem>>, vector<8x32xbf16>,
    %c0_62 = arith.constant 0 : index
    %c0_63 = arith.constant 0 : index
    %131 = vector.load %arg10[%c0_62, %c0_63] : memref<8x32xf32, #tpu.memory_space<vmem>>, vector<8x32xf32>
    tpu.vector_store %arg10[%c0_62, %c0_63], %126 {strides = array<i32>} : memref<8x32xf32, #tpu.memory_space<vmem>>, vector<8x32xf32>,
    %132 = arith.index_cast %c3_i32 : i32 to index
    %c0_64 = arith.constant 0 : index
    %c0_65 = arith.constant 0 : index
    %133 = vector.load %arg6[%132, %c0_64, %c0_65] : memref<8x8x32xbf16, #tpu.memory_space<vmem>>, vector<1x8x32xbf16>
    %134 = vector.shape_cast %133 : vector<1x8x32xbf16> to vector<8x32xbf16>
    %135 = vector.shape_cast %129 : vector<8x32xbf16> to vector<1x8x32xbf16>
    tpu.vector_store %arg6[%132, %c0_64, %c0_65], %135 {strides = array<i32>} : memref<8x8x32xbf16, #tpu.memory_space<vmem>>, vector<1x8x32xbf16>,
    %c4_i32 = arith.constant 4 : i32
    %c0_66 = arith.constant 0 : index
    %c0_67 = arith.constant 0 : index
    %136 = vector.load %arg9[%c0_66, %c0_67] : memref<8x32xbf16, #tpu.memory_space<vmem>>, vector<8x32xbf16>
    %c0_68 = arith.constant 0 : index
    %c0_69 = arith.constant 0 : index
    %137 = vector.load %arg10[%c0_68, %c0_69] : memref<8x32xf32, #tpu.memory_space<vmem>>, vector<8x32xf32>
    %138 = arith.index_cast %c4_i32 : i32 to index
    %c0_70 = arith.constant 0 : index
    %c0_71 = arith.constant 0 : index
    %139 = vector.load %arg2[%138, %c0_70, %c0_71] : memref<8x8x128xbf16, #tpu.memory_space<vmem>>, vector<1x8x128xbf16>
    %140 = vector.shape_cast %139 : vector<1x8x128xbf16> to vector<8x128xbf16>
    %141 = arith.extf %140 : vector<8x128xbf16> to vector<8x128xf32>
    %cst_72 = arith.constant dense<0.000000e+00> : vector<8x128xf32>
    %142 = tpu.matmul %136, %3, %cst_72 {dimension_numbers = #tpu.dot_dimension_numbers<[1], [0], [0], [1], [0, 0, 1, 1], [], []>} : vector<8x32xbf16>, vector<32x128xbf16>, vector<8x128xf32> -> vector<8x128xf32>
    %143 = arith.addf %141, %142 : vector<8x128xf32>
    %144 = vector.extract_strided_slice %143 {offsets = [0, 0], sizes = [8, 96], strides = [1, 1]} : vector<8x128xf32> to vector<8x96xf32>
    %cst_73 = arith.constant 5.000000e-01 : f32
    %145 = vector.broadcast %cst_73 : f32 to vector<8x96xf32>
    %146 = arith.mulf %145, %144 : vector<8x96xf32>
    %147 = math.tanh %146 : vector<8x96xf32>
    %cst_74 = arith.constant 5.000000e-01 : f32
    %148 = vector.broadcast %cst_74 : f32 to vector<8x96xf32>
    %149 = arith.mulf %148, %147 : vector<8x96xf32>
    %cst_75 = arith.constant 5.000000e-01 : f32
    %150 = vector.broadcast %cst_75 : f32 to vector<8x96xf32>
    %151 = arith.addf %149, %150 : vector<8x96xf32>
    %152 = vector.extract_strided_slice %143 {offsets = [0, 96], sizes = [8, 32], strides = [1, 1]} : vector<8x128xf32> to vector<8x32xf32>
    %153 = math.tanh %152 : vector<8x32xf32>
    %154 = vector.extract_strided_slice %151 {offsets = [0, 0], sizes = [8, 32], strides = [1, 1]} : vector<8x96xf32> to vector<8x32xf32>
    %155 = vector.extract_strided_slice %151 {offsets = [0, 32], sizes = [8, 32], strides = [1, 1]} : vector<8x96xf32> to vector<8x32xf32>
    %156 = vector.extract_strided_slice %151 {offsets = [0, 64], sizes = [8, 32], strides = [1, 1]} : vector<8x96xf32> to vector<8x32xf32>
    %157 = arith.mulf %155, %137 : vector<8x32xf32>
    %158 = arith.mulf %154, %153 : vector<8x32xf32>
    %159 = arith.addf %157, %158 : vector<8x32xf32>
    %160 = math.tanh %159 : vector<8x32xf32>
    %161 = arith.mulf %156, %160 : vector<8x32xf32>
    %162 = arith.truncf %161 : vector<8x32xf32> to vector<8x32xbf16>
    %c0_76 = arith.constant 0 : index
    %c0_77 = arith.constant 0 : index
    %163 = vector.load %arg9[%c0_76, %c0_77] : memref<8x32xbf16, #tpu.memory_space<vmem>>, vector<8x32xbf16>
    tpu.vector_store %arg9[%c0_76, %c0_77], %162 {strides = array<i32>} : memref<8x32xbf16, #tpu.memory_space<vmem>>, vector<8x32xbf16>,
    %c0_78 = arith.constant 0 : index
    %c0_79 = arith.constant 0 : index
    %164 = vector.load %arg10[%c0_78, %c0_79] : memref<8x32xf32, #tpu.memory_space<vmem>>, vector<8x32xf32>
    tpu.vector_store %arg10[%c0_78, %c0_79], %159 {strides = array<i32>} : memref<8x32xf32, #tpu.memory_space<vmem>>, vector<8x32xf32>,
    %165 = arith.index_cast %c4_i32 : i32 to index
    %c0_80 = arith.constant 0 : index
    %c0_81 = arith.constant 0 : index
    %166 = vector.load %arg6[%165, %c0_80, %c0_81] : memref<8x8x32xbf16, #tpu.memory_space<vmem>>, vector<1x8x32xbf16>
    %167 = vector.shape_cast %166 : vector<1x8x32xbf16> to vector<8x32xbf16>
    %168 = vector.shape_cast %162 : vector<8x32xbf16> to vector<1x8x32xbf16>
    tpu.vector_store %arg6[%165, %c0_80, %c0_81], %168 {strides = array<i32>} : memref<8x8x32xbf16, #tpu.memory_space<vmem>>, vector<1x8x32xbf16>,
    %c5_i32 = arith.constant 5 : i32
    %c0_82 = arith.constant 0 : index
    %c0_83 = arith.constant 0 : index
    %169 = vector.load %arg9[%c0_82, %c0_83] : memref<8x32xbf16, #tpu.memory_space<vmem>>, vector<8x32xbf16>
    %c0_84 = arith.constant 0 : index
    %c0_85 = arith.constant 0 : index
    %170 = vector.load %arg10[%c0_84, %c0_85] : memref<8x32xf32, #tpu.memory_space<vmem>>, vector<8x32xf32>
    %171 = arith.index_cast %c5_i32 : i32 to index
    %c0_86 = arith.constant 0 : index
    %c0_87 = arith.constant 0 : index
    %172 = vector.load %arg2[%171, %c0_86, %c0_87] : memref<8x8x128xbf16, #tpu.memory_space<vmem>>, vector<1x8x128xbf16>
    %173 = vector.shape_cast %172 : vector<1x8x128xbf16> to vector<8x128xbf16>
    %174 = arith.extf %173 : vector<8x128xbf16> to vector<8x128xf32>
    %cst_88 = arith.constant dense<0.000000e+00> : vector<8x128xf32>
    %175 = tpu.matmul %169, %3, %cst_88 {dimension_numbers = #tpu.dot_dimension_numbers<[1], [0], [0], [1], [0, 0, 1, 1], [], []>} : vector<8x32xbf16>, vector<32x128xbf16>, vector<8x128xf32> -> vector<8x128xf32>
    %176 = arith.addf %174, %175 : vector<8x128xf32>
    %177 = vector.extract_strided_slice %176 {offsets = [0, 0], sizes = [8, 96], strides = [1, 1]} : vector<8x128xf32> to vector<8x96xf32>
    %cst_89 = arith.constant 5.000000e-01 : f32
    %178 = vector.broadcast %cst_89 : f32 to vector<8x96xf32>
    %179 = arith.mulf %178, %177 : vector<8x96xf32>
    %180 = math.tanh %179 : vector<8x96xf32>
    %cst_90 = arith.constant 5.000000e-01 : f32
    %181 = vector.broadcast %cst_90 : f32 to vector<8x96xf32>
    %182 = arith.mulf %181, %180 : vector<8x96xf32>
    %cst_91 = arith.constant 5.000000e-01 : f32
    %183 = vector.broadcast %cst_91 : f32 to vector<8x96xf32>
    %184 = arith.addf %182, %183 : vector<8x96xf32>
    %185 = vector.extract_strided_slice %176 {offsets = [0, 96], sizes = [8, 32], strides = [1, 1]} : vector<8x128xf32> to vector<8x32xf32>
    %186 = math.tanh %185 : vector<8x32xf32>
    %187 = vector.extract_strided_slice %184 {offsets = [0, 0], sizes = [8, 32], strides = [1, 1]} : vector<8x96xf32> to vector<8x32xf32>
    %188 = vector.extract_strided_slice %184 {offsets = [0, 32], sizes = [8, 32], strides = [1, 1]} : vector<8x96xf32> to vector<8x32xf32>
    %189 = vector.extract_strided_slice %184 {offsets = [0, 64], sizes = [8, 32], strides = [1, 1]} : vector<8x96xf32> to vector<8x32xf32>
    %190 = arith.mulf %188, %170 : vector<8x32xf32>
    %191 = arith.mulf %187, %186 : vector<8x32xf32>
    %192 = arith.addf %190, %191 : vector<8x32xf32>
    %193 = math.tanh %192 : vector<8x32xf32>
    %194 = arith.mulf %189, %193 : vector<8x32xf32>
    %195 = arith.truncf %194 : vector<8x32xf32> to vector<8x32xbf16>
    %c0_92 = arith.constant 0 : index
    %c0_93 = arith.constant 0 : index
    %196 = vector.load %arg9[%c0_92, %c0_93] : memref<8x32xbf16, #tpu.memory_space<vmem>>, vector<8x32xbf16>
    tpu.vector_store %arg9[%c0_92, %c0_93], %195 {strides = array<i32>} : memref<8x32xbf16, #tpu.memory_space<vmem>>, vector<8x32xbf16>,
    %c0_94 = arith.constant 0 : index
    %c0_95 = arith.constant 0 : index
    %197 = vector.load %arg10[%c0_94, %c0_95] : memref<8x32xf32, #tpu.memory_space<vmem>>, vector<8x32xf32>
    tpu.vector_store %arg10[%c0_94, %c0_95], %192 {strides = array<i32>} : memref<8x32xf32, #tpu.memory_space<vmem>>, vector<8x32xf32>,
    %198 = arith.index_cast %c5_i32 : i32 to index
    %c0_96 = arith.constant 0 : index
    %c0_97 = arith.constant 0 : index
    %199 = vector.load %arg6[%198, %c0_96, %c0_97] : memref<8x8x32xbf16, #tpu.memory_space<vmem>>, vector<1x8x32xbf16>
    %200 = vector.shape_cast %199 : vector<1x8x32xbf16> to vector<8x32xbf16>
    %201 = vector.shape_cast %195 : vector<8x32xbf16> to vector<1x8x32xbf16>
    tpu.vector_store %arg6[%198, %c0_96, %c0_97], %201 {strides = array<i32>} : memref<8x8x32xbf16, #tpu.memory_space<vmem>>, vector<1x8x32xbf16>,
    %c6_i32 = arith.constant 6 : i32
    %c0_98 = arith.constant 0 : index
    %c0_99 = arith.constant 0 : index
    %202 = vector.load %arg9[%c0_98, %c0_99] : memref<8x32xbf16, #tpu.memory_space<vmem>>, vector<8x32xbf16>
    %c0_100 = arith.constant 0 : index
    %c0_101 = arith.constant 0 : index
    %203 = vector.load %arg10[%c0_100, %c0_101] : memref<8x32xf32, #tpu.memory_space<vmem>>, vector<8x32xf32>
    %204 = arith.index_cast %c6_i32 : i32 to index
    %c0_102 = arith.constant 0 : index
    %c0_103 = arith.constant 0 : index
    %205 = vector.load %arg2[%204, %c0_102, %c0_103] : memref<8x8x128xbf16, #tpu.memory_space<vmem>>, vector<1x8x128xbf16>
    %206 = vector.shape_cast %205 : vector<1x8x128xbf16> to vector<8x128xbf16>
    %207 = arith.extf %206 : vector<8x128xbf16> to vector<8x128xf32>
    %cst_104 = arith.constant dense<0.000000e+00> : vector<8x128xf32>
    %208 = tpu.matmul %202, %3, %cst_104 {dimension_numbers = #tpu.dot_dimension_numbers<[1], [0], [0], [1], [0, 0, 1, 1], [], []>} : vector<8x32xbf16>, vector<32x128xbf16>, vector<8x128xf32> -> vector<8x128xf32>
    %209 = arith.addf %207, %208 : vector<8x128xf32>
    %210 = vector.extract_strided_slice %209 {offsets = [0, 0], sizes = [8, 96], strides = [1, 1]} : vector<8x128xf32> to vector<8x96xf32>
    %cst_105 = arith.constant 5.000000e-01 : f32
    %211 = vector.broadcast %cst_105 : f32 to vector<8x96xf32>
    %212 = arith.mulf %211, %210 : vector<8x96xf32>
    %213 = math.tanh %212 : vector<8x96xf32>
    %cst_106 = arith.constant 5.000000e-01 : f32
    %214 = vector.broadcast %cst_106 : f32 to vector<8x96xf32>
    %215 = arith.mulf %214, %213 : vector<8x96xf32>
    %cst_107 = arith.constant 5.000000e-01 : f32
    %216 = vector.broadcast %cst_107 : f32 to vector<8x96xf32>
    %217 = arith.addf %215, %216 : vector<8x96xf32>
    %218 = vector.extract_strided_slice %209 {offsets = [0, 96], sizes = [8, 32], strides = [1, 1]} : vector<8x128xf32> to vector<8x32xf32>
    %219 = math.tanh %218 : vector<8x32xf32>
    %220 = vector.extract_strided_slice %217 {offsets = [0, 0], sizes = [8, 32], strides = [1, 1]} : vector<8x96xf32> to vector<8x32xf32>
    %221 = vector.extract_strided_slice %217 {offsets = [0, 32], sizes = [8, 32], strides = [1, 1]} : vector<8x96xf32> to vector<8x32xf32>
    %222 = vector.extract_strided_slice %217 {offsets = [0, 64], sizes = [8, 32], strides = [1, 1]} : vector<8x96xf32> to vector<8x32xf32>
    %223 = arith.mulf %221, %203 : vector<8x32xf32>
    %224 = arith.mulf %220, %219 : vector<8x32xf32>
    %225 = arith.addf %223, %224 : vector<8x32xf32>
    %226 = math.tanh %225 : vector<8x32xf32>
    %227 = arith.mulf %222, %226 : vector<8x32xf32>
    %228 = arith.truncf %227 : vector<8x32xf32> to vector<8x32xbf16>
    %c0_108 = arith.constant 0 : index
    %c0_109 = arith.constant 0 : index
    %229 = vector.load %arg9[%c0_108, %c0_109] : memref<8x32xbf16, #tpu.memory_space<vmem>>, vector<8x32xbf16>
    tpu.vector_store %arg9[%c0_108, %c0_109], %228 {strides = array<i32>} : memref<8x32xbf16, #tpu.memory_space<vmem>>, vector<8x32xbf16>,
    %c0_110 = arith.constant 0 : index
    %c0_111 = arith.constant 0 : index
    %230 = vector.load %arg10[%c0_110, %c0_111] : memref<8x32xf32, #tpu.memory_space<vmem>>, vector<8x32xf32>
    tpu.vector_store %arg10[%c0_110, %c0_111], %225 {strides = array<i32>} : memref<8x32xf32, #tpu.memory_space<vmem>>, vector<8x32xf32>,
    %231 = arith.index_cast %c6_i32 : i32 to index
    %c0_112 = arith.constant 0 : index
    %c0_113 = arith.constant 0 : index
    %232 = vector.load %arg6[%231, %c0_112, %c0_113] : memref<8x8x32xbf16, #tpu.memory_space<vmem>>, vector<1x8x32xbf16>
    %233 = vector.shape_cast %232 : vector<1x8x32xbf16> to vector<8x32xbf16>
    %234 = vector.shape_cast %228 : vector<8x32xbf16> to vector<1x8x32xbf16>
    tpu.vector_store %arg6[%231, %c0_112, %c0_113], %234 {strides = array<i32>} : memref<8x8x32xbf16, #tpu.memory_space<vmem>>, vector<1x8x32xbf16>,
    %c7_i32 = arith.constant 7 : i32
    %c0_114 = arith.constant 0 : index
    %c0_115 = arith.constant 0 : index
    %235 = vector.load %arg9[%c0_114, %c0_115] : memref<8x32xbf16, #tpu.memory_space<vmem>>, vector<8x32xbf16>
    %c0_116 = arith.constant 0 : index
    %c0_117 = arith.constant 0 : index
    %236 = vector.load %arg10[%c0_116, %c0_117] : memref<8x32xf32, #tpu.memory_space<vmem>>, vector<8x32xf32>
    %237 = arith.index_cast %c7_i32 : i32 to index
    %c0_118 = arith.constant 0 : index
    %c0_119 = arith.constant 0 : index
    %238 = vector.load %arg2[%237, %c0_118, %c0_119] : memref<8x8x128xbf16, #tpu.memory_space<vmem>>, vector<1x8x128xbf16>
    %239 = vector.shape_cast %238 : vector<1x8x128xbf16> to vector<8x128xbf16>
    %240 = arith.extf %239 : vector<8x128xbf16> to vector<8x128xf32>
    %cst_120 = arith.constant dense<0.000000e+00> : vector<8x128xf32>
    %241 = tpu.matmul %235, %3, %cst_120 {dimension_numbers = #tpu.dot_dimension_numbers<[1], [0], [0], [1], [0, 0, 1, 1], [], []>} : vector<8x32xbf16>, vector<32x128xbf16>, vector<8x128xf32> -> vector<8x128xf32>
    %242 = arith.addf %240, %241 : vector<8x128xf32>
    %243 = vector.extract_strided_slice %242 {offsets = [0, 0], sizes = [8, 96], strides = [1, 1]} : vector<8x128xf32> to vector<8x96xf32>
    %cst_121 = arith.constant 5.000000e-01 : f32
    %244 = vector.broadcast %cst_121 : f32 to vector<8x96xf32>
    %245 = arith.mulf %244, %243 : vector<8x96xf32>
    %246 = math.tanh %245 : vector<8x96xf32>
    %cst_122 = arith.constant 5.000000e-01 : f32
    %247 = vector.broadcast %cst_122 : f32 to vector<8x96xf32>
    %248 = arith.mulf %247, %246 : vector<8x96xf32>
    %cst_123 = arith.constant 5.000000e-01 : f32
    %249 = vector.broadcast %cst_123 : f32 to vector<8x96xf32>
    %250 = arith.addf %248, %249 : vector<8x96xf32>
    %251 = vector.extract_strided_slice %242 {offsets = [0, 96], sizes = [8, 32], strides = [1, 1]} : vector<8x128xf32> to vector<8x32xf32>
    %252 = math.tanh %251 : vector<8x32xf32>
    %253 = vector.extract_strided_slice %250 {offsets = [0, 0], sizes = [8, 32], strides = [1, 1]} : vector<8x96xf32> to vector<8x32xf32>
    %254 = vector.extract_strided_slice %250 {offsets = [0, 32], sizes = [8, 32], strides = [1, 1]} : vector<8x96xf32> to vector<8x32xf32>
    %255 = vector.extract_strided_slice %250 {offsets = [0, 64], sizes = [8, 32], strides = [1, 1]} : vector<8x96xf32> to vector<8x32xf32>
    %256 = arith.mulf %254, %236 : vector<8x32xf32>
    %257 = arith.mulf %253, %252 : vector<8x32xf32>
    %258 = arith.addf %256, %257 : vector<8x32xf32>
    %259 = math.tanh %258 : vector<8x32xf32>
    %260 = arith.mulf %255, %259 : vector<8x32xf32>
    %261 = arith.truncf %260 : vector<8x32xf32> to vector<8x32xbf16>
    %c0_124 = arith.constant 0 : index
    %c0_125 = arith.constant 0 : index
    %262 = vector.load %arg9[%c0_124, %c0_125] : memref<8x32xbf16, #tpu.memory_space<vmem>>, vector<8x32xbf16>
    tpu.vector_store %arg9[%c0_124, %c0_125], %261 {strides = array<i32>} : memref<8x32xbf16, #tpu.memory_space<vmem>>, vector<8x32xbf16>,
    %c0_126 = arith.constant 0 : index
    %c0_127 = arith.constant 0 : index
    %263 = vector.load %arg10[%c0_126, %c0_127] : memref<8x32xf32, #tpu.memory_space<vmem>>, vector<8x32xf32>
    tpu.vector_store %arg10[%c0_126, %c0_127], %258 {strides = array<i32>} : memref<8x32xf32, #tpu.memory_space<vmem>>, vector<8x32xf32>,
    %264 = arith.index_cast %c7_i32 : i32 to index
    %c0_128 = arith.constant 0 : index
    %c0_129 = arith.constant 0 : index
    %265 = vector.load %arg6[%264, %c0_128, %c0_129] : memref<8x8x32xbf16, #tpu.memory_space<vmem>>, vector<1x8x32xbf16>
    %266 = vector.shape_cast %265 : vector<1x8x32xbf16> to vector<8x32xbf16>
    %267 = vector.shape_cast %261 : vector<8x32xbf16> to vector<1x8x32xbf16>
    tpu.vector_store %arg6[%264, %c0_128, %c0_129], %267 {strides = array<i32>} : memref<8x8x32xbf16, #tpu.memory_space<vmem>>, vector<1x8x32xbf16>,
    %c8_i32 = arith.constant 8 : i32
    %c0_i32_130 = arith.constant 0 : i32
    %268 = arith.cmpi eq, %arg1, %c0_i32_130 : i32
    %269 = arith.extui %268 : i1 to i32
    %c0_i32_131 = arith.constant 0 : i32
    %270 = arith.cmpi ne, %269, %c0_i32_131 : i32
    scf.if %270 {
      %c0_132 = arith.constant 0 : index
      %c0_133 = arith.constant 0 : index
      %271 = vector.load %arg9[%c0_132, %c0_133] : memref<8x32xbf16, #tpu.memory_space<vmem>>, vector<8x32xbf16>
      %272 = arith.extf %271 : vector<8x32xbf16> to vector<8x32xf32>
      %c0_134 = arith.constant 0 : index
      %c0_135 = arith.constant 0 : index
      %273 = vector.load %arg7[%c0_134, %c0_135] : memref<8x32xf32, #tpu.memory_space<vmem>>, vector<8x32xf32>
      tpu.vector_store %arg7[%c0_134, %c0_135], %272 {strides = array<i32>} : memref<8x32xf32, #tpu.memory_space<vmem>>, vector<8x32xf32>,
      %c0_136 = arith.constant 0 : index
      %c0_137 = arith.constant 0 : index
      %274 = vector.load %arg10[%c0_136, %c0_137] : memref<8x32xf32, #tpu.memory_space<vmem>>, vector<8x32xf32>
      %c0_138 = arith.constant 0 : index
      %c0_139 = arith.constant 0 : index
      %275 = vector.load %arg8[%c0_138, %c0_139] : memref<8x32xf32, #tpu.memory_space<vmem>>, vector<8x32xf32>
      tpu.vector_store %arg8[%c0_138, %c0_139], %274 {strides = array<i32>} : memref<8x32xf32, #tpu.memory_space<vmem>>, vector<8x32xf32>,
    } else {
    }
    return
  }
  func.func @transform_0(%arg0: i32, %arg1: i32) -> (i32, i32, i32) {
    %c0_i32 = arith.constant 0 : i32
    %c0_i32_0 = arith.constant 0 : i32
    return %arg1, %arg0, %c0_i32 : i32, i32, i32
  }
  func.func @transform_1(%arg0: i32, %arg1: i32) -> (i32, i32) {
    %c0_i32 = arith.constant 0 : i32
    %c0_i32_0 = arith.constant 0 : i32
    return %arg0, %c0_i32 : i32, i32
  }
  func.func @transform_2(%arg0: i32, %arg1: i32) -> (i32, i32) {
    %c0_i32 = arith.constant 0 : i32
    %c0_i32_0 = arith.constant 0 : i32
    return %arg0, %c0_i32 : i32, i32
  }
  func.func @transform_4(%arg0: i32, %arg1: i32) -> (i32, i32, i32) {
    %c0_i32 = arith.constant 0 : i32
    %c0_i32_0 = arith.constant 0 : i32
    return %arg1, %arg0, %c0_i32 : i32, i32, i32
  }
  func.func @transform_5(%arg0: i32, %arg1: i32) -> (i32, i32) {
    %c0_i32 = arith.constant 0 : i32
    %c0_i32_0 = arith.constant 0 : i32
    return %arg0, %c0_i32 : i32, i32
  }
  func.func @transform_6(%arg0: i32, %arg1: i32) -> (i32, i32) {
    %c0_i32 = arith.constant 0 : i32
    %c0_i32_0 = arith.constant 0 : i32
    return %arg0, %c0_i32 : i32, i32
  }
}

</mosaic_0001>

<llo_original>
// kernel: lstm_model_v2_forward.13
$region0: #{lstm_model_v2_forward.13}
  #allocation0 [shape = 'u32[]', space=smem, size = 0x4, offset = 0x4, fixed_abs, tag = 'smem constant byte address 0x4 - core index']
  #allocation1 [shape = 'u32[144,128]{1,0:T(1,128)}', space=vmem, size = 0x12000, scoped, tag = 'internal scratch']
  %s0 = inlined_call_operand.vmem [shape: bf16[128,32], index: 0, kind: input, shape index: {}]
  %s1 = inlined_call_operand.vmem [shape: bf16[32,256], index: 1, kind: input, shape index: {}]
  %s2 = inlined_call_operand.vmem [shape: f32[1,256], index: 2, kind: input, shape index: {}]
  %s3 = inlined_call_operand.hbm [shape: f32[128,256], index: 3, kind: output, shape index: {}]
  %s4 = sld [smem:[#allocation0]]
  $region22: #{lstm_model_v2_forward.13} parent=0
    _
  %s6 = ssub.s32 1, %s4
  %s7 = scalar_select 0, %s6, %s4
  $region1: #{lstm_model_v2_forward.13} parent=0
    #allocation2 [shape = 'u8[131072]{0}', space=vmem, size = 0x20000, scoped, tag = 'output window, operand 0, single buffered']
    #allocation3 [shape = 's32[1]{0}', space=sflag, size = 0x4, scoped, tag = 'scoped memory for lstm_model_v2_forward.13']
    %8 = vsyncpa [#allocation3], 0
    // Predicated region
    $region2: #{lstm_model_v2_forward.13} parent=1 // pred_check
      _
    $region3: #{lstm_model_v2_forward.13} parent=1 // pred_check_branch
      %10 = sbr.rel (0) target = $region5
    $region4: #{lstm_model_v2_forward.13} parent=1 // pred_region
      _
    $region5: #{lstm_model_v2_forward.13} parent=1 // pred_fallthru
      _
    // Predicated region
    $region6: #{lstm_model_v2_forward.13} parent=1 // pred_check
      _
    $region7: #{lstm_model_v2_forward.13} parent=1 // pred_check_branch
      %12 = sbr.rel (0) target = $region9
    $region8: #{lstm_model_v2_forward.13} parent=1 // pred_region
      _
    $region9: #{lstm_model_v2_forward.13} parent=1 // pred_fallthru
      _
    // Predicated region
    $region10: #{lstm_model_v2_forward.13} parent=1 // pred_check
      _
    $region11: #{lstm_model_v2_forward.13} parent=1 // pred_check_branch
      %14 = sbr.rel (0) target = $region13
    $region12: #{lstm_model_v2_forward.13} parent=1 // pred_region
      _
    $region13: #{lstm_model_v2_forward.13} parent=1 // pred_fallthru
      _
    %v16 = vld [vmem:[%s0] sm:$0xf]
    %v17 = vld [vmem:[%s0 + $0x4] sm:$0xf]
    %v18 = vld [vmem:[%s0 + $0x8] sm:$0xf]
    %v19 = vld [vmem:[%s0 + $0xc] sm:$0xf]
    %v20 = vld [vmem:[%s0 + $0x10] sm:$0xf]
    %v21 = vld [vmem:[%s0 + $0x14] sm:$0xf]
    %v22 = vld [vmem:[%s0 + $0x18] sm:$0xf]
    %v23 = vld [vmem:[%s0 + $0x1c] sm:$0xf]
    %v24 = vld [vmem:[%s0 + $0x20] sm:$0xf]
    %v25 = vld [vmem:[%s0 + $0x24] sm:$0xf]
    %v26 = vld [vmem:[%s0 + $0x28] sm:$0xf]
    %v27 = vld [vmem:[%s0 + $0x2c] sm:$0xf]
    %v28 = vld [vmem:[%s0 + $0x30] sm:$0xf]
    %v29 = vld [vmem:[%s0 + $0x34] sm:$0xf]
    %v30 = vld [vmem:[%s0 + $0x38] sm:$0xf]
    %v31 = vld [vmem:[%s0 + $0x3c] sm:$0xf]
    %v32 = vld [vmem:[%s1] sm:$0xff]
    %v33 = vld [vmem:[%s1 + $0x8] sm:$0xff]
    %v34 = vld [vmem:[%s1 + $0x10] sm:$0xff]
    %v35 = vld [vmem:[%s1 + $0x18] sm:$0xff]
    %v36 = vld [vmem:[%s2] sm:$0x3]
    %v38 = vlaneseq
    %v39 = vshrl.u32 %v38, 7
    %v40 = vsub.s32 0, %v39
    %v41 = vrot.slane %v36, %v40
    %v42 = vlaneseq
    %v43 = vshrl.u32 %v42, 7
    %v44 = vsub.s32 1, %v43
    %v45 = vrot.slane %v36, %v44
    %v64 = vunpack.c.l.b16 %v16
    %v65 = vunpack.c.l.b16 %v17
    %v66 = vunpack.c.l.b16 %v18
    %v67 = vunpack.c.l.b16 %v19
    %v68 = vunpack.c.l.b16 %v20
    %v69 = vunpack.c.l.b16 %v21
    %v70 = vunpack.c.l.b16 %v22
    %v71 = vunpack.c.l.b16 %v23
    %v72 = vunpack.c.l.b16 %v24
    %v73 = vunpack.c.l.b16 %v25
    %v74 = vunpack.c.l.b16 %v26
    %v75 = vunpack.c.l.b16 %v27
    %v76 = vunpack.c.l.b16 %v28
    %v77 = vunpack.c.l.b16 %v29
    %v78 = vunpack.c.l.b16 %v30
    %v79 = vunpack.c.l.b16 %v31
    %v80 = vpack.c.b16 %v65, %v64
    %v81 = vpack.c.b16 %v67, %v66
    %v82 = vpack.c.b16 %v69, %v68
    %v83 = vpack.c.b16 %v71, %v70
    %v84 = vpack.c.b16 %v73, %v72
    %v85 = vpack.c.b16 %v75, %v74
    %v86 = vpack.c.b16 %v77, %v76
    %v87 = vpack.c.b16 %v79, %v78
    %v92 = vunpack.c.l.b16 %v32
    %v93 = vunpack.c.h.b16 %v32
    %v94 = vunpack.c.l.b16 %v33
    %v95 = vunpack.c.h.b16 %v33
    %v96 = vunpack.c.l.b16 %v34
    %v97 = vunpack.c.h.b16 %v34
    %v98 = vunpack.c.l.b16 %v35
    %v99 = vunpack.c.h.b16 %v35
    %v100 = vpack.c.b16 %v94, %v92
    %v101 = vpack.c.b16 %v95, %v93
    %v102 = vpack.c.b16 %v98, %v96
    %v103 = vpack.c.b16 %v99, %v97
    %vm108 = vcmask 261120
    %v110 = vsel %vm108, %v80, 0
    %v113 = vsel %vm108, %v81, 0
    %v116 = vsel %vm108, %v82, 0
    %v119 = vsel %vm108, %v83, 0
    %v122 = vsel %vm108, %v84, 0
    %v125 = vsel %vm108, %v85, 0
    %v128 = vsel %vm108, %v86, 0
    %v131 = vsel %vm108, %v87, 0
    %133 = vmatprep.subr.bf16.mxu0 %v101
    %134 = vmatpush1.bf16.msra.mxu0 %v100
    %135 = vmatprep.subr.bf16.mxu0 %v103
    %136 = vmatpush1.bf16.msra.mxu0 %v102
    %137 = vmatprep.subr.bf16.mxu0 0
    %138 = vmatpush1.bf16.msra.mxu0 0
    %139 = vmatprep.subr.bf16.mxu0 0
    %140 = vmatpush1.bf16.msra.mxu0 0
    %141 = vmatprep.subr.bf16.mxu0 0
    %142 = vmatpush1.bf16.msra.mxu0 0
    %143 = vmatprep.subr.bf16.mxu0 0
    %144 = vmatpush1.bf16.msra.mxu0 0
    %145 = vmatprep.subr.bf16.mxu0 0
    %146 = vmatpush1.bf16.msra.mxu0 0
    %147 = vmatprep.subr.bf16.mxu0 0
    %148 = vmatpush1.bf16.msra.mxu0 0
    %149 = vmatprep.subr.bf16.mxu0 0
    %150 = vmatpush1.bf16.msra.mxu0 0
    %151 = vmatprep.subr.bf16.mxu0 0
    %152 = vmatpush1.bf16.msra.mxu0 0
    %153 = vmatprep.subr.bf16.mxu0 0
    %154 = vmatpush1.bf16.msra.mxu0 0
    %155 = vmatprep.subr.bf16.mxu0 0
    %156 = vmatpush1.bf16.msra.mxu0 0
    %157 = vmatprep.subr.bf16.mxu0 0
    %158 = vmatpush1.bf16.msra.mxu0 0
    %159 = vmatprep.subr.bf16.mxu0 0
    %160 = vmatpush1.bf16.msra.mxu0 0
    %161 = vmatprep.subr.bf16.mxu0 0
    %162 = vmatpush1.bf16.msra.mxu0 0
    %163 = vmatprep.subr.bf16.mxu0 0
    %164 = vmatpush1.bf16.msra.mxu0 0
    %165 = vmatprep.mubr.bf16.mxu0 0
    %166 = vmatmul.mubr.bf16.gmra.mrb[0].mxu0 %v110
    %v167 = vpop.f32.mrb[0].mxu0
    %v168 = vadd.f32 %v41, %v167
    %v169 = vpop.f32.mrb[0].mxu0
    %v170 = vadd.f32 %v45, %v169
    %v171 = vpop.f32.mrb[0].mxu0
    %v172 = vadd.f32 %v41, %v171
    %v173 = vpop.f32.mrb[0].mxu0
    %v174 = vadd.f32 %v45, %v173
    %175 = vmatprep.mubr.bf16.mxu0 0
    %176 = vmatmul.mubr.bf16.gmra.mrb[0].mxu0 %v113
    %v177 = vpop.f32.mrb[0].mxu0
    %v178 = vadd.f32 %v41, %v177
    %v179 = vpop.f32.mrb[0].mxu0
    %v180 = vadd.f32 %v45, %v179
    %v181 = vpop.f32.mrb[0].mxu0
    %v182 = vadd.f32 %v41, %v181
    %v183 = vpop.f32.mrb[0].mxu0
    %v184 = vadd.f32 %v45, %v183
    %185 = vmatprep.mubr.bf16.mxu0 0
    %186 = vmatmul.mubr.bf16.gmra.mrb[0].mxu0 %v116
    %v187 = vpop.f32.mrb[0].mxu0
    %v188 = vadd.f32 %v41, %v187
    %v189 = vpop.f32.mrb[0].mxu0
    %v190 = vadd.f32 %v45, %v189
    %v191 = vpop.f32.mrb[0].mxu0
    %v192 = vadd.f32 %v41, %v191
    %v193 = vpop.f32.mrb[0].mxu0
    %v194 = vadd.f32 %v45, %v193
    %195 = vmatprep.mubr.bf16.mxu0 0
    %196 = vmatmul.mubr.bf16.gmra.mrb[0].mxu0 %v119
    %v197 = vpop.f32.mrb[0].mxu0
    %v198 = vadd.f32 %v41, %v197
    %v199 = vpop.f32.mrb[0].mxu0
    %v200 = vadd.f32 %v45, %v199
    %v201 = vpop.f32.mrb[0].mxu0
    %v202 = vadd.f32 %v41, %v201
    %v203 = vpop.f32.mrb[0].mxu0
    %v204 = vadd.f32 %v45, %v203
    %205 = vmatprep.mubr.bf16.mxu0 0
    %206 = vmatmul.mubr.bf16.gmra.mrb[0].mxu0 %v122
    %v207 = vpop.f32.mrb[0].mxu0
    %v208 = vadd.f32 %v41, %v207
    %v209 = vpop.f32.mrb[0].mxu0
    %v210 = vadd.f32 %v45, %v209
    %v211 = vpop.f32.mrb[0].mxu0
    %v212 = vadd.f32 %v41, %v211
    %v213 = vpop.f32.mrb[0].mxu0
    %v214 = vadd.f32 %v45, %v213
    %215 = vmatprep.mubr.bf16.mxu0 0
    %216 = vmatmul.mubr.bf16.gmra.mrb[0].mxu0 %v125
    %v217 = vpop.f32.mrb[0].mxu0
    %v218 = vadd.f32 %v41, %v217
    %v219 = vpop.f32.mrb[0].mxu0
    %v220 = vadd.f32 %v45, %v219
    %v221 = vpop.f32.mrb[0].mxu0
    %v222 = vadd.f32 %v41, %v221
    %v223 = vpop.f32.mrb[0].mxu0
    %v224 = vadd.f32 %v45, %v223
    %225 = vmatprep.mubr.bf16.mxu0 0
    %226 = vmatmul.mubr.bf16.gmra.mrb[0].mxu0 %v128
    %v227 = vpop.f32.mrb[0].mxu0
    %v228 = vadd.f32 %v41, %v227
    %v229 = vpop.f32.mrb[0].mxu0
    %v230 = vadd.f32 %v45, %v229
    %v231 = vpop.f32.mrb[0].mxu0
    %v232 = vadd.f32 %v41, %v231
    %v233 = vpop.f32.mrb[0].mxu0
    %v234 = vadd.f32 %v45, %v233
    %235 = vmatprep.mubr.bf16.mxu0 0
    %236 = vmatmul.mubr.bf16.gmra.mrb[0].mxu0 %v131
    %v237 = vpop.f32.mrb[0].mxu0
    %v238 = vadd.f32 %v41, %v237
    %v239 = vpop.f32.mrb[0].mxu0
    %v240 = vadd.f32 %v45, %v239
    %v241 = vpop.f32.mrb[0].mxu0
    %v242 = vadd.f32 %v41, %v241
    %v243 = vpop.f32.mrb[0].mxu0
    %v244 = vadd.f32 %v45, %v243
    %245 = vdwg.mxu0
    %246 = vst [vmem:[#allocation2] sm:$0xff] %v168
    %247 = vst [vmem:[#allocation2 + $0x8] sm:$0xff] %v170
    %248 = vst [vmem:[#allocation2 + $0x10] sm:$0xff] %v172
    %249 = vst [vmem:[#allocation2 + $0x18] sm:$0xff] %v174
    %250 = vst [vmem:[#allocation2 + $0x20] sm:$0xff] %v178
    %251 = vst [vmem:[#allocation2 + $0x28] sm:$0xff] %v180
    %252 = vst [vmem:[#allocation2 + $0x30] sm:$0xff] %v182
    %253 = vst [vmem:[#allocation2 + $0x38] sm:$0xff] %v184
    %254 = vst [vmem:[#allocation2 + $0x40] sm:$0xff] %v188
    %255 = vst [vmem:[#allocation2 + $0x48] sm:$0xff] %v190
    %256 = vst [vmem:[#allocation2 + $0x50] sm:$0xff] %v192
    %257 = vst [vmem:[#allocation2 + $0x58] sm:$0xff] %v194
    %258 = vst [vmem:[#allocation2 + $0x60] sm:$0xff] %v198
    %259 = vst [vmem:[#allocation2 + $0x68] sm:$0xff] %v200
    %260 = vst [vmem:[#allocation2 + $0x70] sm:$0xff] %v202
    %261 = vst [vmem:[#allocation2 + $0x78] sm:$0xff] %v204
    %262 = vst [vmem:[#allocation2 + $0x80] sm:$0xff] %v208
    %263 = vst [vmem:[#allocation2 + $0x88] sm:$0xff] %v210
    %264 = vst [vmem:[#allocation2 + $0x90] sm:$0xff] %v212
    %265 = vst [vmem:[#allocation2 + $0x98] sm:$0xff] %v214
    %266 = vst [vmem:[#allocation2 + $0xa0] sm:$0xff] %v218
    %267 = vst [vmem:[#allocation2 + $0xa8] sm:$0xff] %v220
    %268 = vst [vmem:[#allocation2 + $0xb0] sm:$0xff] %v222
    %269 = vst [vmem:[#allocation2 + $0xb8] sm:$0xff] %v224
    %270 = vst [vmem:[#allocation2 + $0xc0] sm:$0xff] %v228
    %271 = vst [vmem:[#allocation2 + $0xc8] sm:$0xff] %v230
    %272 = vst [vmem:[#allocation2 + $0xd0] sm:$0xff] %v232
    %273 = vst [vmem:[#allocation2 + $0xd8] sm:$0xff] %v234
    %274 = vst [vmem:[#allocation2 + $0xe0] sm:$0xff] %v238
    %275 = vst [vmem:[#allocation2 + $0xe8] sm:$0xff] %v240
    %276 = vst [vmem:[#allocation2 + $0xf0] sm:$0xff] %v242
    %277 = vst [vmem:[#allocation2 + $0xf8] sm:$0xff] %v244
    // Predicated region
    $region14: #{lstm_model_v2_forward.13} parent=1 // pred_check
      _
    $region15: #{lstm_model_v2_forward.13} parent=1 // pred_check_branch
      %279 = sbr.rel (0) target = $region17
    $region16: #{lstm_model_v2_forward.13} parent=1 // pred_region
      %s281 = ssub.s32 4096, 4096
      %282 = vsyncadd [#allocation3], %s281
      %s283 = sshll.u32 [#allocation2], 4
      %s284 = int_to_ptr.vmem [resolvable:$true] %s283
      %289 = dma.vmem_to_hbm [thread:$0]  %s284, 4096, %s3, [#allocation3], 256, 256, 16
    $region17: #{lstm_model_v2_forward.13} parent=1 // pred_fallthru
      _
    // Predicated region
    $region18: #{lstm_model_v2_forward.13} parent=1 // pred_check
      _
    $region19: #{lstm_model_v2_forward.13} parent=1 // pred_check_branch
      %291 = sbr.rel (0) target = $region21
    $region20: #{lstm_model_v2_forward.13} parent=1 // pred_region
      %292 = dma.done [#allocation3], 4096
    $region21: #{lstm_model_v2_forward.13} parent=1 // pred_fallthru
      _
    %293 = vsyncpa [#allocation3], 1

// kernel: lstm_model_v2_forward.7
$region0: #{lstm_model_v2_forward.7}
  #allocation0 [shape = 'u32[]', space=smem, size = 0x4, offset = 0x4, fixed_abs, tag = 'smem constant byte address 0x4 - core index']
  #allocation1 [shape = 'u32[144,128]{1,0:T(1,128)}', space=vmem, size = 0x12000, scoped, tag = 'internal scratch']
  %s0 = inlined_call_operand.vmem [shape: bf16[128,32], index: 0, kind: input, shape index: {}]
  %s1 = inlined_call_operand.vmem [shape: bf16[32,128], index: 1, kind: input, shape index: {}]
  %s2 = inlined_call_operand.vmem [shape: f32[1,128], index: 2, kind: input, shape index: {}]
  %s3 = inlined_call_operand.vmem [shape: bf16[128,128], index: 3, kind: output, shape index: {}]
  %s4 = sld [smem:[#allocation0]]
  $region22: #{lstm_model_v2_forward.7} parent=0
    _
  %s6 = ssub.s32 1, %s4
  %s7 = scalar_select 0, %s6, %s4
  // Predicated region
  $region2: #{lstm_model_v2_forward.7} parent=0 // pred_check
    _
  $region3: #{lstm_model_v2_forward.7} parent=0 // pred_check_branch
    %9 = sbr.rel (0) target = $region5
  $region4: #{lstm_model_v2_forward.7} parent=0 // pred_region
    _
  $region5: #{lstm_model_v2_forward.7} parent=0 // pred_fallthru
    _
  // Predicated region
  $region6: #{lstm_model_v2_forward.7} parent=0 // pred_check
    _
  $region7: #{lstm_model_v2_forward.7} parent=0 // pred_check_branch
    %11 = sbr.rel (0) target = $region9
  $region8: #{lstm_model_v2_forward.7} parent=0 // pred_region
    _
  $region9: #{lstm_model_v2_forward.7} parent=0 // pred_fallthru
    _
  // Predicated region
  $region10: #{lstm_model_v2_forward.7} parent=0 // pred_check
    _
  $region11: #{lstm_model_v2_forward.7} parent=0 // pred_check_branch
    %13 = sbr.rel (0) target = $region13
  $region12: #{lstm_model_v2_forward.7} parent=0 // pred_region
    _
  $region13: #{lstm_model_v2_forward.7} parent=0 // pred_fallthru
    _
  %v15 = vld [vmem:[%s0] sm:$0xf]
  %v16 = vld [vmem:[%s0 + $0x4] sm:$0xf]
  %v17 = vld [vmem:[%s0 + $0x8] sm:$0xf]
  %v18 = vld [vmem:[%s0 + $0xc] sm:$0xf]
  %v19 = vld [vmem:[%s0 + $0x10] sm:$0xf]
  %v20 = vld [vmem:[%s0 + $0x14] sm:$0xf]
  %v21 = vld [vmem:[%s0 + $0x18] sm:$0xf]
  %v22 = vld [vmem:[%s0 + $0x1c] sm:$0xf]
  %v23 = vld [vmem:[%s0 + $0x20] sm:$0xf]
  %v24 = vld [vmem:[%s0 + $0x24] sm:$0xf]
  %v25 = vld [vmem:[%s0 + $0x28] sm:$0xf]
  %v26 = vld [vmem:[%s0 + $0x2c] sm:$0xf]
  %v27 = vld [vmem:[%s0 + $0x30] sm:$0xf]
  %v28 = vld [vmem:[%s0 + $0x34] sm:$0xf]
  %v29 = vld [vmem:[%s0 + $0x38] sm:$0xf]
  %v30 = vld [vmem:[%s0 + $0x3c] sm:$0xf]
  %v31 = vld [vmem:[%s1] sm:$0xf]
  %v32 = vld [vmem:[%s1 + $0x4] sm:$0xf]
  %v33 = vld [vmem:[%s1 + $0x8] sm:$0xf]
  %v34 = vld [vmem:[%s1 + $0xc] sm:$0xf]
  %v35 = vld [vmem:[%s2] sm:$0x1]
  %v37 = vlaneseq
  %v38 = vshrl.u32 %v37, 7
  %v39 = vsub.s32 0, %v38
  %v40 = vrot.slane %v35, %v39
  %v58 = vunpack.c.l.b16 %v15
  %v59 = vunpack.c.l.b16 %v16
  %v60 = vunpack.c.l.b16 %v17
  %v61 = vunpack.c.l.b16 %v18
  %v62 = vunpack.c.l.b16 %v19
  %v63 = vunpack.c.l.b16 %v20
  %v64 = vunpack.c.l.b16 %v21
  %v65 = vunpack.c.l.b16 %v22
  %v66 = vunpack.c.l.b16 %v23
  %v67 = vunpack.c.l.b16 %v24
  %v68 = vunpack.c.l.b16 %v25
  %v69 = vunpack.c.l.b16 %v26
  %v70 = vunpack.c.l.b16 %v27
  %v71 = vunpack.c.l.b16 %v28
  %v72 = vunpack.c.l.b16 %v29
  %v73 = vunpack.c.l.b16 %v30
  %v74 = vpack.c.b16 %v59, %v58
  %v75 = vpack.c.b16 %v61, %v60
  %v76 = vpack.c.b16 %v63, %v62
  %v77 = vpack.c.b16 %v65, %v64
  %v78 = vpack.c.b16 %v67, %v66
  %v79 = vpack.c.b16 %v69, %v68
  %v80 = vpack.c.b16 %v71, %v70
  %v81 = vpack.c.b16 %v73, %v72
  %v86 = vunpack.c.l.b16 %v31
  %v87 = vunpack.c.l.b16 %v32
  %v88 = vunpack.c.l.b16 %v33
  %v89 = vunpack.c.l.b16 %v34
  %v90 = vpack.c.b16 %v87, %v86
  %v91 = vpack.c.b16 %v89, %v88
  %vm94 = vcmask 261120
  %v96 = vsel %vm94, %v74, 0
  %v99 = vsel %vm94, %v75, 0
  %v102 = vsel %vm94, %v76, 0
  %v105 = vsel %vm94, %v77, 0
  %v108 = vsel %vm94, %v78, 0
  %v111 = vsel %vm94, %v79, 0
  %v114 = vsel %vm94, %v80, 0
  %v117 = vsel %vm94, %v81, 0
  %119 = vmatprep.subr.bf16.mxu0 0
  %120 = vmatpush1.bf16.msra.mxu0 %v90
  %121 = vmatprep.subr.bf16.mxu0 0
  %122 = vmatpush1.bf16.msra.mxu0 %v91
  %123 = vmatprep.subr.bf16.mxu0 0
  %124 = vmatpush1.bf16.msra.mxu0 0
  %125 = vmatprep.subr.bf16.mxu0 0
  %126 = vmatpush1.bf16.msra.mxu0 0
  %127 = vmatprep.subr.bf16.mxu0 0
  %128 = vmatpush1.bf16.msra.mxu0 0
  %129 = vmatprep.subr.bf16.mxu0 0
  %130 = vmatpush1.bf16.msra.mxu0 0
  %131 = vmatprep.subr.bf16.mxu0 0
  %132 = vmatpush1.bf16.msra.mxu0 0
  %133 = vmatprep.subr.bf16.mxu0 0
  %134 = vmatpush1.bf16.msra.mxu0 0
  %135 = vmatprep.subr.bf16.mxu0 0
  %136 = vmatpush1.bf16.msra.mxu0 0
  %137 = vmatprep.subr.bf16.mxu0 0
  %138 = vmatpush1.bf16.msra.mxu0 0
  %139 = vmatprep.subr.bf16.mxu0 0
  %140 = vmatpush1.bf16.msra.mxu0 0
  %141 = vmatprep.subr.bf16.mxu0 0
  %142 = vmatpush1.bf16.msra.mxu0 0
  %143 = vmatprep.subr.bf16.mxu0 0
  %144 = vmatpush1.bf16.msra.mxu0 0
  %145 = vmatprep.subr.bf16.mxu0 0
  %146 = vmatpush1.bf16.msra.mxu0 0
  %147 = vmatprep.subr.bf16.mxu0 0
  %148 = vmatpush1.bf16.msra.mxu0 0
  %149 = vmatprep.subr.bf16.mxu0 0
  %150 = vmatpush1.bf16.msra.mxu0 0
  %151 = vmatprep.mubr.bf16.mxu0 0
  %152 = vmatmul.mubr.bf16.gmra.mrb[0].mxu0 %v96
  %v153 = vpop.f32.mrb[0].mxu0
  %v154 = vadd.f32 %v40, %v153
  %v155 = vpop.f32.mrb[0].mxu0
  %v156 = vpop.f32.mrb[0].mxu0
  %v157 = vadd.f32 %v40, %v156
  %v158 = vpop.f32.mrb[0].mxu0
  %159 = vmatprep.mubr.bf16.mxu0 0
  %160 = vmatmul.mubr.bf16.gmra.mrb[0].mxu0 %v99
  %v161 = vpop.f32.mrb[0].mxu0
  %v162 = vadd.f32 %v40, %v161
  %v163 = vpop.f32.mrb[0].mxu0
  %v164 = vpop.f32.mrb[0].mxu0
  %v165 = vadd.f32 %v40, %v164
  %v166 = vpop.f32.mrb[0].mxu0
  %167 = vmatprep.mubr.bf16.mxu0 0
  %168 = vmatmul.mubr.bf16.gmra.mrb[0].mxu0 %v102
  %v169 = vpop.f32.mrb[0].mxu0
  %v170 = vadd.f32 %v40, %v169
  %v171 = vpop.f32.mrb[0].mxu0
  %v172 = vpop.f32.mrb[0].mxu0
  %v173 = vadd.f32 %v40, %v172
  %v174 = vpop.f32.mrb[0].mxu0
  %175 = vmatprep.mubr.bf16.mxu0 0
  %176 = vmatmul.mubr.bf16.gmra.mrb[0].mxu0 %v105
  %v177 = vpop.f32.mrb[0].mxu0
  %v178 = vadd.f32 %v40, %v177
  %v179 = vpop.f32.mrb[0].mxu0
  %v180 = vpop.f32.mrb[0].mxu0
  %v181 = vadd.f32 %v40, %v180
  %v182 = vpop.f32.mrb[0].mxu0
  %183 = vmatprep.mubr.bf16.mxu0 0
  %184 = vmatmul.mubr.bf16.gmra.mrb[0].mxu0 %v108
  %v185 = vpop.f32.mrb[0].mxu0
  %v186 = vadd.f32 %v40, %v185
  %v187 = vpop.f32.mrb[0].mxu0
  %v188 = vpop.f32.mrb[0].mxu0
  %v189 = vadd.f32 %v40, %v188
  %v190 = vpop.f32.mrb[0].mxu0
  %191 = vmatprep.mubr.bf16.mxu0 0
  %192 = vmatmul.mubr.bf16.gmra.mrb[0].mxu0 %v111
  %v193 = vpop.f32.mrb[0].mxu0
  %v194 = vadd.f32 %v40, %v193
  %v195 = vpop.f32.mrb[0].mxu0
  %v196 = vpop.f32.mrb[0].mxu0
  %v197 = vadd.f32 %v40, %v196
  %v198 = vpop.f32.mrb[0].mxu0
  %199 = vmatprep.mubr.bf16.mxu0 0
  %200 = vmatmul.mubr.bf16.gmra.mrb[0].mxu0 %v114
  %v201 = vpop.f32.mrb[0].mxu0
  %v202 = vadd.f32 %v40, %v201
  %v203 = vpop.f32.mrb[0].mxu0
  %v204 = vpop.f32.mrb[0].mxu0
  %v205 = vadd.f32 %v40, %v204
  %v206 = vpop.f32.mrb[0].mxu0
  %207 = vmatprep.mubr.bf16.mxu0 0
  %208 = vmatmul.mubr.bf16.gmra.mrb[0].mxu0 %v117
  %v209 = vpop.f32.mrb[0].mxu0
  %v210 = vadd.f32 %v40, %v209
  %v211 = vpop.f32.mrb[0].mxu0
  %v212 = vpop.f32.mrb[0].mxu0
  %v213 = vadd.f32 %v40, %v212
  %v214 = vpop.f32.mrb[0].mxu0
  %215 = vdwg.mxu0
  %v216 = vpack.c.bf16 %v157, %v154
  %v217 = vpack.c.bf16 %v165, %v162
  %v218 = vpack.c.bf16 %v173, %v170
  %v219 = vpack.c.bf16 %v181, %v178
  %v220 = vpack.c.bf16 %v189, %v186
  %v221 = vpack.c.bf16 %v197, %v194
  %v222 = vpack.c.bf16 %v205, %v202
  %v223 = vpack.c.bf16 %v213, %v210
  %v232 = vunpack.c.l.b16 %v216
  %v233 = vunpack.c.h.b16 %v216
  %v234 = vunpack.c.l.b16 %v217
  %v235 = vunpack.c.h.b16 %v217
  %v236 = vunpack.c.l.b16 %v218
  %v237 = vunpack.c.h.b16 %v218
  %v238 = vunpack.c.l.b16 %v219
  %v239 = vunpack.c.h.b16 %v219
  %v240 = vunpack.c.l.b16 %v220
  %v241 = vunpack.c.h.b16 %v220
  %v242 = vunpack.c.l.b16 %v221
  %v243 = vunpack.c.h.b16 %v221
  %v244 = vunpack.c.l.b16 %v222
  %v245 = vunpack.c.h.b16 %v222
  %v246 = vunpack.c.l.b16 %v223
  %v247 = vunpack.c.h.b16 %v223
  %v248 = vpack.c.b16 %v232, %v232
  %v249 = vpack.c.b16 %v233, %v233
  %v250 = vpack.c.b16 %v234, %v234
  %v251 = vpack.c.b16 %v235, %v235
  %v252 = vpack.c.b16 %v236, %v236
  %v253 = vpack.c.b16 %v237, %v237
  %v254 = vpack.c.b16 %v238, %v238
  %v255 = vpack.c.b16 %v239, %v239
  %v256 = vpack.c.b16 %v240, %v240
  %v257 = vpack.c.b16 %v241, %v241
  %v258 = vpack.c.b16 %v242, %v242
  %v259 = vpack.c.b16 %v243, %v243
  %v260 = vpack.c.b16 %v244, %v244
  %v261 = vpack.c.b16 %v245, %v245
  %v262 = vpack.c.b16 %v246, %v246
  %v263 = vpack.c.b16 %v247, %v247
  %280 = vst [vmem:[%s3] sm:$0xf] %v248
  %281 = vst [vmem:[%s3 + $0x4] sm:$0xf] %v249
  %282 = vst [vmem:[%s3 + $0x8] sm:$0xf] %v250
  %283 = vst [vmem:[%s3 + $0xc] sm:$0xf] %v251
  %284 = vst [vmem:[%s3 + $0x10] sm:$0xf] %v252
  %285 = vst [vmem:[%s3 + $0x14] sm:$0xf] %v253
  %286 = vst [vmem:[%s3 + $0x18] sm:$0xf] %v254
  %287 = vst [vmem:[%s3 + $0x1c] sm:$0xf] %v255
  %288 = vst [vmem:[%s3 + $0x20] sm:$0xf] %v256
  %289 = vst [vmem:[%s3 + $0x24] sm:$0xf] %v257
  %290 = vst [vmem:[%s3 + $0x28] sm:$0xf] %v258
  %291 = vst [vmem:[%s3 + $0x2c] sm:$0xf] %v259
  %292 = vst [vmem:[%s3 + $0x30] sm:$0xf] %v260
  %293 = vst [vmem:[%s3 + $0x34] sm:$0xf] %v261
  %294 = vst [vmem:[%s3 + $0x38] sm:$0xf] %v262
  %295 = vst [vmem:[%s3 + $0x3c] sm:$0xf] %v263
  // Predicated region
  $region14: #{lstm_model_v2_forward.7} parent=0 // pred_check
    _
  $region15: #{lstm_model_v2_forward.7} parent=0 // pred_check_branch
    %297 = sbr.rel (0) target = $region17
  $region16: #{lstm_model_v2_forward.7} parent=0 // pred_region
    _
  $region17: #{lstm_model_v2_forward.7} parent=0 // pred_fallthru
    _
  // Predicated region
  $region18: #{lstm_model_v2_forward.7} parent=0 // pred_check
    _
  $region19: #{lstm_model_v2_forward.7} parent=0 // pred_check_branch
    %299 = sbr.rel (0) target = $region21
  $region20: #{lstm_model_v2_forward.7} parent=0 // pred_region
    _
  $region21: #{lstm_model_v2_forward.7} parent=0 // pred_fallthru
    _

// kernel: lstm_model_v2_forward.8
$region0: #{lstm_model_v2_forward.8}
  #allocation0 [shape = 'u32[]', space=smem, size = 0x4, offset = 0x4, fixed_abs, tag = 'smem constant byte address 0x4 - core index']
  #allocation1 [shape = 'u32[144,128]{1,0:T(1,128)}', space=vmem, size = 0x12000, scoped, tag = 'internal scratch']
  #allocation2 [shape = 'bf16[8,32]{1,0:T(8,128)(2,1)}', space=vmem, size = 0x800, scoped, tag = 'scratch operand']
  #allocation3 [shape = 'f32[8,32]{1,0:T(8,128)}', space=vmem, size = 0x1000, scoped, tag = 'scratch operand']
  #allocation4 [shape = 'bf16[32,128]{1,0:T(16,128)(2,1)}', space=vmem, size = 0x2000, scoped, tag = 'scratch operand']
  #allocation5 [shape = 's32[1]{0}', space=sflag, size = 0x4, scoped, tag = 'scratch operand']
  #allocation8 [shape = 's32[]', space=sflag, size = 0x4, offset = 0, fixed_abs, tag = 'sflag constant byte address 0x0 - dummy sync flag']
  %s0 = inlined_call_operand.vmem [shape: bf16[8,16,128], index: 0, kind: input, shape index: {}]
  %s1 = inlined_call_operand.vmem [shape: f32[16,32], index: 1, kind: input, shape index: {}]
  %s2 = inlined_call_operand.vmem [shape: f32[16,32], index: 2, kind: input, shape index: {}]
  %s3 = inlined_call_operand.vmem [shape: bf16[32,128], index: 3, kind: input, shape index: {}]
  %s4 = inlined_call_operand.vmem [shape: bf16[8,16,32], index: 4, kind: output, shape index: {0}]
  %s5 = inlined_call_operand.vmem [shape: f32[16,32], index: 5, kind: output, shape index: {1}]
  %s6 = inlined_call_operand.vmem [shape: f32[16,32], index: 6, kind: output, shape index: {2}]
  %7 = xla_tuple %s4, %s5, %s6
  %s8 = sld [smem:[#allocation0]]
  $region181: #{lstm_model_v2_forward.8} parent=0
    _
  %s10 = ssub.s32 1, %s8
  %s11 = scalar_select 0, %s10, %s8
  $region1: #{lstm_model_v2_forward.8} parent=0
    #allocation6 [shape = 'u8[32768]{0}', space=vmem, size = 0x8000, scoped, tag = 'input window, operand 0']
    #allocation7 [shape = 'u8[32768]{0}', space=vmem, size = 0x8000, scoped, tag = 'output window, operand 0']
    loop: start=0, step=1, limit=4
    $region2: #{lstm_model_v2_forward.8} parent=1 // loop_pre_header
      _
    $region3: #{lstm_model_v2_forward.8} parent=1 // loop_header
      %s13 = sphi 0, %s17
      %p14 = scmp.ge.s32.totalorder %s13, 4
      %s20 = sphi 0, %s32
      %s21 = sphi 0, %s28
      %s22 = sphi 0, %s20
      %s23 = sphi 0, %s21
      %s24 = sphi 0, %s22
      %s25 = sphi 0, %s23
      %s37 = sphi 0, %s39
      %s40 = sphi 0, %s37
      %s41 = sphi 0, %s40
      %s57 = sphi 0, %s41
      %s63 = sphi 0, %s65
      %s66 = sphi 0, %s63
      %s67 = sphi 0, %s66
      %s83 = sphi 0, %s67
      %s89 = sphi 0, %s91
      %s92 = sphi 0, %s89
      %s93 = sphi 0, %s92
      %s109 = sphi 0, %s93
      %s117 = sphi 0, %s119
      %s120 = sphi 0, %s117
      %s121 = sphi 0, %s120
      %s137 = sphi 0, %s121
      %s143 = sphi 0, %s145
      %s146 = sphi 0, %s143
      %s147 = sphi 0, %s146
      %s163 = sphi 0, %s147
      %s169 = sphi 0, %s171
      %s172 = sphi 0, %s169
      %s173 = sphi 0, %s172
      %s189 = sphi 0, %s173
    $region4: #{lstm_model_v2_forward.8} parent=1 // loop_header_branch
      %16 = sbr.rel (%p14) target = $region8
    $region5: #{lstm_model_v2_forward.8} parent=1 // loop_body
      %s18 = ssub.s32 %s13, 1
      %s19 = ssub.s32 %s13, 2
      %s26 = sadd.s32 1, %s21
      %p27 = scmp.ge.s32.totalorder %s26, 1
      %s28 = scalar_select %p27, 0, %s26
      %s29 = sadd.s32 1, %s20
      %s30 = scalar_select %p27, %s29, %s20
      %p31 = scmp.ge.s32.totalorder %s30, 2
      %s32 = scalar_select %p31, 0, %s30
      %s33 = ssub.s32 %s21, %s28
      %s34 = ssub.s32 %s20, %s32
      %s35 = sor.u32 %s33, %s34
      %p36 = scmp.eq.s32.totalorder %s35, 0
      %s38 = sadd.s32 %s37, 1
      %s39 = scalar_select %p36, %s37, %s38
      %p42 = pneg %p36
      %p43 = scmp.eq.s32.totalorder %s13, 1
      %p44 = por %p42, %p43
      %p45 = scmp.ne.s32.totalorder %s37, %s40
      %p46 = scmp.eq.s32.totalorder %s13, 0
      %p47 = por %p45, %p46
      %p48 = scmp.ne.s32.totalorder %s37, %s40
      %p49 = scmp.eq.s32.totalorder %s18, 1
      %p50 = por %p48, %p49
      %p51 = scmp.ne.s32.totalorder %s40, %s41
      %p52 = scmp.eq.s32.totalorder %s18, 0
      %p53 = por %p51, %p52
      %p54 = scmp.ne.s32.totalorder %s40, %s41
      %p55 = scmp.eq.s32.totalorder %s19, 1
      %p56 = por %p54, %p55
      %p58 = scmp.ne.s32.totalorder %s41, %s57
      %p59 = scmp.eq.s32.totalorder %s19, 0
      %p60 = por %p58, %p59
      %s61 = ssub.s32 %s20, %s32
      %p62 = scmp.eq.s32.totalorder %s61, 0
      %s64 = sadd.s32 %s63, 1
      %s65 = scalar_select %p62, %s63, %s64
      %p68 = pneg %p62
      %p69 = scmp.eq.s32.totalorder %s13, 1
      %p70 = por %p68, %p69
      %p71 = scmp.ne.s32.totalorder %s63, %s66
      %p72 = scmp.eq.s32.totalorder %s13, 0
      %p73 = por %p71, %p72
      %p74 = scmp.ne.s32.totalorder %s63, %s66
      %p75 = scmp.eq.s32.totalorder %s18, 1
      %p76 = por %p74, %p75
      %p77 = scmp.ne.s32.totalorder %s66, %s67
      %p78 = scmp.eq.s32.totalorder %s18, 0
      %p79 = por %p77, %p78
      %p80 = scmp.ne.s32.totalorder %s66, %s67
      %p81 = scmp.eq.s32.totalorder %s19, 1
      %p82 = por %p80, %p81
      %p84 = scmp.ne.s32.totalorder %s67, %s83
      %p85 = scmp.eq.s32.totalorder %s19, 0
      %p86 = por %p84, %p85
      %s87 = ssub.s32 %s20, %s32
      %p88 = scmp.eq.s32.totalorder %s87, 0
      %s90 = sadd.s32 %s89, 1
      %s91 = scalar_select %p88, %s89, %s90
      %p94 = pneg %p88
      %p95 = scmp.eq.s32.totalorder %s13, 1
      %p96 = por %p94, %p95
      %p97 = scmp.ne.s32.totalorder %s89, %s92
      %p98 = scmp.eq.s32.totalorder %s13, 0
      %p99 = por %p97, %p98
      %p100 = scmp.ne.s32.totalorder %s89, %s92
      %p101 = scmp.eq.s32.totalorder %s18, 1
      %p102 = por %p100, %p101
      %p103 = scmp.ne.s32.totalorder %s92, %s93
      %p104 = scmp.eq.s32.totalorder %s18, 0
      %p105 = por %p103, %p104
      %p106 = scmp.ne.s32.totalorder %s92, %s93
      %p107 = scmp.eq.s32.totalorder %s19, 1
      %p108 = por %p106, %p107
      %p110 = scmp.ne.s32.totalorder %s93, %s109
      %p111 = scmp.eq.s32.totalorder %s19, 0
      %p112 = por %p110, %p111
      %s113 = ssub.s32 %s21, %s28
      %s114 = ssub.s32 %s20, %s32
      %s115 = sor.u32 %s113, %s114
      %p116 = scmp.eq.s32.totalorder %s115, 0
      %s118 = sadd.s32 %s117, 1
      %s119 = scalar_select %p116, %s117, %s118
      %p122 = pneg %p116
      %p123 = scmp.eq.s32.totalorder %s13, 1
      %p124 = por %p122, %p123
      %p125 = scmp.ne.s32.totalorder %s117, %s120
      %p126 = scmp.eq.s32.totalorder %s13, 0
      %p127 = por %p125, %p126
      %p128 = scmp.ne.s32.totalorder %s117, %s120
      %p129 = scmp.eq.s32.totalorder %s18, 1
      %p130 = por %p128, %p129
      %p131 = scmp.ne.s32.totalorder %s120, %s121
      %p132 = scmp.eq.s32.totalorder %s18, 0
      %p133 = por %p131, %p132
      %p134 = scmp.ne.s32.totalorder %s120, %s121
      %p135 = scmp.eq.s32.totalorder %s19, 1
      %p136 = por %p134, %p135
      %p138 = scmp.ne.s32.totalorder %s121, %s137
      %p139 = scmp.eq.s32.totalorder %s19, 0
      %p140 = por %p138, %p139
      %s141 = ssub.s32 %s20, %s32
      %p142 = scmp.eq.s32.totalorder %s141, 0
      %s144 = sadd.s32 %s143, 1
      %s145 = scalar_select %p142, %s143, %s144
      %p148 = pneg %p142
      %p149 = scmp.eq.s32.totalorder %s13, 1
      %p150 = por %p148, %p149
      %p151 = scmp.ne.s32.totalorder %s143, %s146
      %p152 = scmp.eq.s32.totalorder %s13, 0
      %p153 = por %p151, %p152
      %p154 = scmp.ne.s32.totalorder %s143, %s146
      %p155 = scmp.eq.s32.totalorder %s18, 1
      %p156 = por %p154, %p155
      %p157 = scmp.ne.s32.totalorder %s146, %s147
      %p158 = scmp.eq.s32.totalorder %s18, 0
      %p159 = por %p157, %p158
      %p160 = scmp.ne.s32.totalorder %s146, %s147
      %p161 = scmp.eq.s32.totalorder %s19, 1
      %p162 = por %p160, %p161
      %p164 = scmp.ne.s32.totalorder %s147, %s163
      %p165 = scmp.eq.s32.totalorder %s19, 0
      %p166 = por %p164, %p165
      %s167 = ssub.s32 %s20, %s32
      %p168 = scmp.eq.s32.totalorder %s167, 0
      %s170 = sadd.s32 %s169, 1
      %s171 = scalar_select %p168, %s169, %s170
      %p174 = pneg %p168
      %p175 = scmp.eq.s32.totalorder %s13, 1
      %p176 = por %p174, %p175
      %p177 = scmp.ne.s32.totalorder %s169, %s172
      %p178 = scmp.eq.s32.totalorder %s13, 0
      %p179 = por %p177, %p178
      %p180 = scmp.ne.s32.totalorder %s169, %s172
      %p181 = scmp.eq.s32.totalorder %s18, 1
      %p182 = por %p180, %p181
      %p183 = scmp.ne.s32.totalorder %s172, %s173
      %p184 = scmp.eq.s32.totalorder %s18, 0
      %p185 = por %p183, %p184
      %p186 = scmp.ne.s32.totalorder %s172, %s173
      %p187 = scmp.eq.s32.totalorder %s19, 1
      %p188 = por %p186, %p187
      %p190 = scmp.ne.s32.totalorder %s173, %s189
      %p191 = scmp.eq.s32.totalorder %s19, 0
      %p192 = por %p190, %p191
      %p193 = scmp.le.s32.totalorder 1, %s13
      %p194 = scmp.lt.s32.totalorder %s13, 3
      %p195 = pnand %p193, %p194
      %p196 = pneg %p195
      // Predicated region
      $region9: #{lstm_model_v2_forward.8} parent=5 // pred_check
        _
      $region10: #{lstm_model_v2_forward.8} parent=5 // pred_check_branch
        %198 = sbr.rel (%p195) target = $region12
      $region11: #{lstm_model_v2_forward.8} parent=5 // pred_region
        %s199 = ssub.s32 %s13, 1
      $region12: #{lstm_model_v2_forward.8} parent=5 // pred_fallthru
        _
      %p200 = scmp.lt.s32.totalorder %s13, 2
      // Predicated region
      $region13: #{lstm_model_v2_forward.8} parent=5 // pred_check
        %p201 = pneg %p200
      $region14: #{lstm_model_v2_forward.8} parent=5 // pred_check_branch
        %203 = sbr.rel (%p201) target = $region16
      $region15: #{lstm_model_v2_forward.8} parent=5 // pred_region
        // Predicated region
        $region17: #{lstm_model_v2_forward.8} parent=15 // pred_check
          %p204 = pneg %p47
        $region18: #{lstm_model_v2_forward.8} parent=15 // pred_check_branch
          %206 = sbr.rel (%p204) target = $region20
        $region19: #{lstm_model_v2_forward.8} parent=15 // pred_region
          %s207 = sand.u32 %s37, 1
          %s208 = sand.u32 %s37, 1
          %s209 = smul.addr %s208, 32
          %s210 = scalar_lea.vmem [#allocation6], %s209
          %s211 = smul.u32 8, %s21
          %s212 = smul.addr %s211, 2
          %s213 = sadd.s32 %s20, %s212
          %s214 = smul.addr %s213, 4
          %s215 = scalar_lea.vmem %s0, %s214
          // Predicated region
          $region21: #{lstm_model_v2_forward.8} parent=19 // pred_check
            _
          $region22: #{lstm_model_v2_forward.8} parent=19 // pred_check_branch
            %217 = sbr.rel (0) target = $region24
          $region23: #{lstm_model_v2_forward.8} parent=19 // pred_region
            // Predicated region
            $region25: #{lstm_model_v2_forward.8} parent=23 // pred_check
              _
            $region26: #{lstm_model_v2_forward.8} parent=23 // pred_check_branch
              %219 = sbr.rel target = $region28
            $region27: #{lstm_model_v2_forward.8} parent=23 // pred_region
              // Predicated region
              $region40: #{lstm_model_v2_forward.8} parent=27 // pred_check
                _
              $region41: #{lstm_model_v2_forward.8} parent=27 // pred_check_branch
                %248 = sbr.rel (0) target = $region43
              $region42: #{lstm_model_v2_forward.8} parent=27 // pred_region
                loop: start=0, step=1, limit=1
                $region44: #{lstm_model_v2_forward.8} parent=42 // loop_pre_header
                  _
                $region45: #{lstm_model_v2_forward.8} parent=42 // loop_header
                  %s250 = sphi 0, %s254
                  %p251 = scmp.ge.s32.totalorder %s250, 1
                  %s255 = sphi %s215, %s215
                  %s256 = sphi %s210, %s210
                $region46: #{lstm_model_v2_forward.8} parent=42 // loop_header_branch
                  %253 = sbr.rel (%p251) target = $region50
                $region47: #{lstm_model_v2_forward.8} parent=42 // loop_body
                  _
                $region48: #{lstm_model_v2_forward.8} parent=42 // loop_footer
                  %s254 = sadd.s32 1, %s250
                $region49: #{lstm_model_v2_forward.8} parent=42 // loop_footer_branch
                  %249 = sbr.rel target = $region45
                $region50: #{lstm_model_v2_forward.8} parent=42 // loop_exit
                  _
                loop: start=0, step=1, limit=1
                $region51: #{lstm_model_v2_forward.8} parent=42 // loop_pre_header
                  _
                $region52: #{lstm_model_v2_forward.8} parent=42 // loop_header
                  %s259 = sphi 0, %s263
                  %p260 = scmp.ge.s32.totalorder %s259, 1
                  %s264 = sphi %s215, %s215
                  %s265 = sphi %s210, %s210
                $region53: #{lstm_model_v2_forward.8} parent=42 // loop_header_branch
                  %262 = sbr.rel (%p260) target = $region57
                $region54: #{lstm_model_v2_forward.8} parent=42 // loop_body
                  %v266 = vld [vmem:[%s264] sm:$0xf]
                  %267 = vst [vmem:[%s265] sm:$0xf] %v266
                  %v268 = vld [vmem:[%s264 + $0x8] sm:$0xf]
                  %269 = vst [vmem:[%s265 + $0x4] sm:$0xf] %v268
                  %v270 = vld [vmem:[%s264 + $0x10] sm:$0xf]
                  %271 = vst [vmem:[%s265 + $0x8] sm:$0xf] %v270
                  %v272 = vld [vmem:[%s264 + $0x18] sm:$0xf]
                  %273 = vst [vmem:[%s265 + $0xc] sm:$0xf] %v272
                  %v274 = vld [vmem:[%s264 + $0x20] sm:$0xf]
                  %275 = vst [vmem:[%s265 + $0x10] sm:$0xf] %v274
                  %v276 = vld [vmem:[%s264 + $0x28] sm:$0xf]
                  %277 = vst [vmem:[%s265 + $0x14] sm:$0xf] %v276
                  %v278 = vld [vmem:[%s264 + $0x30] sm:$0xf]
                  %279 = vst [vmem:[%s265 + $0x18] sm:$0xf] %v278
                  %v280 = vld [vmem:[%s264 + $0x38] sm:$0xf]
                  %281 = vst [vmem:[%s265 + $0x1c] sm:$0xf] %v280
                $region55: #{lstm_model_v2_forward.8} parent=42 // loop_footer
                  %s263 = sadd.s32 1, %s259
                $region56: #{lstm_model_v2_forward.8} parent=42 // loop_footer_branch
                  %258 = sbr.rel target = $region52
                $region57: #{lstm_model_v2_forward.8} parent=42 // loop_exit
                  _
              $region43: #{lstm_model_v2_forward.8} parent=27 // pred_fallthru
                _
            $region28: #{lstm_model_v2_forward.8} parent=23 // pred_fallthru
              _
            // Predicated region
            $region29: #{lstm_model_v2_forward.8} parent=23 // pred_check
              _
            $region30: #{lstm_model_v2_forward.8} parent=23 // pred_check_branch
              %221 = sbr.rel (0) target = $region32
            $region31: #{lstm_model_v2_forward.8} parent=23 // pred_region
              loop: start=0, step=1, limit=1
              $region33: #{lstm_model_v2_forward.8} parent=31 // loop_pre_header
                _
              $region34: #{lstm_model_v2_forward.8} parent=31 // loop_header
                %s224 = sphi 0, %s228
                %p225 = scmp.ge.s32.totalorder %s224, 1
                %s229 = sphi %s215, %s215
                %s230 = sphi %s210, %s210
              $region35: #{lstm_model_v2_forward.8} parent=31 // loop_header_branch
                %227 = sbr.rel (%p225) target = $region39
              $region36: #{lstm_model_v2_forward.8} parent=31 // loop_body
                %v231 = vld [vmem:[%s229] sm:$0xf]
                %232 = vst [vmem:[%s230] sm:$0xf] %v231
                %v233 = vld [vmem:[%s229 + $0x8] sm:$0xf]
                %234 = vst [vmem:[%s230 + $0x4] sm:$0xf] %v233
                %v235 = vld [vmem:[%s229 + $0x10] sm:$0xf]
                %236 = vst [vmem:[%s230 + $0x8] sm:$0xf] %v235
                %v237 = vld [vmem:[%s229 + $0x18] sm:$0xf]
                %238 = vst [vmem:[%s230 + $0xc] sm:$0xf] %v237
                %v239 = vld [vmem:[%s229 + $0x20] sm:$0xf]
                %240 = vst [vmem:[%s230 + $0x10] sm:$0xf] %v239
                %v241 = vld [vmem:[%s229 + $0x28] sm:$0xf]
                %242 = vst [vmem:[%s230 + $0x14] sm:$0xf] %v241
                %v243 = vld [vmem:[%s229 + $0x30] sm:$0xf]
                %244 = vst [vmem:[%s230 + $0x18] sm:$0xf] %v243
                %v245 = vld [vmem:[%s229 + $0x38] sm:$0xf]
                %246 = vst [vmem:[%s230 + $0x1c] sm:$0xf] %v245
              $region37: #{lstm_model_v2_forward.8} parent=31 // loop_footer
                %s228 = sadd.s32 1, %s224
              $region38: #{lstm_model_v2_forward.8} parent=31 // loop_footer_branch
                %223 = sbr.rel target = $region34
              $region39: #{lstm_model_v2_forward.8} parent=31 // loop_exit
                _
            $region32: #{lstm_model_v2_forward.8} parent=23 // pred_fallthru
              _
          $region24: #{lstm_model_v2_forward.8} parent=19 // pred_fallthru
            _
          %282 = vnop
        $region20: #{lstm_model_v2_forward.8} parent=15 // pred_fallthru
          _
        // Predicated region
        $region58: #{lstm_model_v2_forward.8} parent=15 // pred_check
          %p283 = pneg %p73
        $region59: #{lstm_model_v2_forward.8} parent=15 // pred_check_branch
          %285 = sbr.rel (%p283) target = $region61
        $region60: #{lstm_model_v2_forward.8} parent=15 // pred_region
          %p286 = scmp.lt.s32.totalorder %s20, 1
          %s287 = scalar_select %p286, %s20, 1
          %s288 = smul.addr %s287, 8
          %s289 = scalar_lea.vmem %s1, %s288
        $region61: #{lstm_model_v2_forward.8} parent=15 // pred_fallthru
          _
        // Predicated region
        $region62: #{lstm_model_v2_forward.8} parent=15 // pred_check
          %p290 = pneg %p99
        $region63: #{lstm_model_v2_forward.8} parent=15 // pred_check_branch
          %292 = sbr.rel (%p290) target = $region65
        $region64: #{lstm_model_v2_forward.8} parent=15 // pred_region
          %p293 = scmp.lt.s32.totalorder %s20, 1
          %s294 = scalar_select %p293, %s20, 1
          %s295 = smul.addr %s294, 8
          %s296 = scalar_lea.vmem %s2, %s295
        $region65: #{lstm_model_v2_forward.8} parent=15 // pred_fallthru
          _
      $region16: #{lstm_model_v2_forward.8} parent=5 // pred_fallthru
        _
      %p297 = scmp.le.s32.totalorder 1, %s13
      %p298 = scmp.lt.s32.totalorder %s13, 3
      %p299 = pnand %p297, %p298
      %p300 = pneg %p299
      // Predicated region
      $region66: #{lstm_model_v2_forward.8} parent=5 // pred_check
        _
      $region67: #{lstm_model_v2_forward.8} parent=5 // pred_check_branch
        %302 = sbr.rel (%p299) target = $region69
      $region68: #{lstm_model_v2_forward.8} parent=5 // pred_region
        %s303 = ssub.s32 %s13, 1
        %s304 = sand.u32 %s40, 1
        %s305 = sand.u32 %s40, 1
        %s306 = smul.addr %s305, 32
        %s307 = scalar_lea.vmem [#allocation6], %s306
        // Predicated region
        $region70: #{lstm_model_v2_forward.8} parent=68 // pred_check
          %p308 = pneg %p53
        $region71: #{lstm_model_v2_forward.8} parent=68 // pred_check_branch
          %310 = sbr.rel (%p308) target = $region73
        $region72: #{lstm_model_v2_forward.8} parent=68 // pred_region
          _
        $region73: #{lstm_model_v2_forward.8} parent=68 // pred_fallthru
          _
        %s311 = sand.u32 %s40, 1
        %s312 = sand.u32 %s40, 1
        %s313 = smul.addr %s312, 32
        %s314 = scalar_lea.vmem [#allocation6], %s313
        %p315 = pneg %p53
        %p316 = pneg %p50
        %p317 = scmp.lt.s32.totalorder %s22, 1
        %s318 = scalar_select %p317, %s22, 1
        %s319 = smul.addr %s318, 8
        %s320 = scalar_lea.vmem %s1, %s319
        %p321 = pneg %p79
        %p322 = pneg %p76
        %p323 = scmp.lt.s32.totalorder %s22, 1
        %s324 = scalar_select %p323, %s22, 1
        %s325 = smul.addr %s324, 8
        %s326 = scalar_lea.vmem %s2, %s325
        %p327 = pneg %p105
        %p328 = pneg %p102
        %p329 = pneg %p133
        %p330 = pneg %p130
        %s331 = sand.u32 %s120, 1
        %s332 = sand.u32 %s120, 1
        %s333 = smul.addr %s332, 32
        %s334 = scalar_lea.vmem [#allocation7], %s333
        %p335 = pneg %p159
        %p336 = pneg %p156
        %p337 = scmp.lt.s32.totalorder %s22, 1
        %s338 = scalar_select %p337, %s22, 1
        %s339 = smul.addr %s338, 8
        %s340 = scalar_lea.vmem %s5, %s339
        %p341 = pneg %p185
        %p342 = pneg %p182
        %p343 = scmp.lt.s32.totalorder %s22, 1
        %s344 = scalar_select %p343, %s22, 1
        %s345 = smul.addr %s344, 8
        %s346 = scalar_lea.vmem %s6, %s345
        %s347 = smul.u32 8, %s23
        %p348 = scmp.lt.s32.totalorder %s22, 1
        %s349 = scalar_select %p348, %s22, 1
        %s350 = smul.addr %s349, 8
        %s351 = scalar_lea.vmem %s1, %s350
        %p352 = scmp.lt.s32.totalorder %s22, 1
        %s353 = scalar_select %p352, %s22, 1
        %s354 = smul.addr %s353, 8
        %s355 = scalar_lea.vmem %s2, %s354
        %s356 = smul.u32 8, %s23
        %p357 = scmp.lt.s32.totalorder %s22, 1
        %s358 = scalar_select %p357, %s22, 1
        %s359 = smul.addr %s358, 8
        %s360 = scalar_lea.vmem %s5, %s359
        %p361 = scmp.lt.s32.totalorder %s22, 1
        %s362 = scalar_select %p361, %s22, 1
        %s363 = smul.addr %s362, 8
        %s364 = scalar_lea.vmem %s6, %s363
        %p366 = scmp.eq.s32.totalorder %s23, 0
        // Predicated region
        $region74: #{lstm_model_v2_forward.8} parent=68 // pred_check
          %p367 = pneg %p366
        $region75: #{lstm_model_v2_forward.8} parent=68 // pred_check_branch
          %369 = sbr.rel (%p367) target = $region77
        $region76: #{lstm_model_v2_forward.8} parent=68 // pred_region
          %p371 = scmp.lt.u32.totalorder 16, 8
          %p372 = pneg %p371
          // Predicated region
          $region78: #{lstm_model_v2_forward.8} parent=76 // pred_check
            _
          $region79: #{lstm_model_v2_forward.8} parent=76 // pred_check_branch
            %374 = sbr.rel (%p371) target = $region81
          $region80: #{lstm_model_v2_forward.8} parent=76 // pred_region
            %s389 = sand.u32 16, 7
            %p390 = scmp.eq.s32.totalorder %s389, 0
            // Predicated region
            $region93: #{lstm_model_v2_forward.8} parent=80 // pred_check
              %p391 = pneg %p390
            $region94: #{lstm_model_v2_forward.8} parent=80 // pred_check_branch
              %393 = sbr.rel (%p391) target = $region96
            $region95: #{lstm_model_v2_forward.8} parent=80 // pred_region
              loop: start=0, step=1, limit=1
              $region97: #{lstm_model_v2_forward.8} parent=95 // loop_pre_header
                _
              $region98: #{lstm_model_v2_forward.8} parent=95 // loop_header
                %s395 = sphi 0, %s399
                %p396 = scmp.ge.s32.totalorder %s395, 1
                %s400 = sphi %s3, %s3
                %s401 = sphi [#allocation4], [#allocation4]
              $region99: #{lstm_model_v2_forward.8} parent=95 // loop_header_branch
                %398 = sbr.rel (%p396) target = $region103
              $region100: #{lstm_model_v2_forward.8} parent=95 // loop_body
                %v402 = vld [vmem:[%s400] sm:$0xff]
                %403 = vst [vmem:[%s401] sm:$0xff] %v402
                %v404 = vld [vmem:[%s400 + $0x8] sm:$0xff]
                %405 = vst [vmem:[%s401 + $0x8] sm:$0xff] %v404
              $region101: #{lstm_model_v2_forward.8} parent=95 // loop_footer
                %s399 = sadd.s32 1, %s395
              $region102: #{lstm_model_v2_forward.8} parent=95 // loop_footer_branch
                %394 = sbr.rel target = $region98
              $region103: #{lstm_model_v2_forward.8} parent=95 // loop_exit
                _
            $region96: #{lstm_model_v2_forward.8} parent=80 // pred_fallthru
              _
            %p406 = pneg %p390
            // Predicated region
            $region104: #{lstm_model_v2_forward.8} parent=80 // pred_check
              _
            $region105: #{lstm_model_v2_forward.8} parent=80 // pred_check_branch
              %408 = sbr.rel (%p390) target = $region107
            $region106: #{lstm_model_v2_forward.8} parent=80 // pred_region
              %s409 = sand.u32 16, 7
            $region107: #{lstm_model_v2_forward.8} parent=80 // pred_fallthru
              _
          $region81: #{lstm_model_v2_forward.8} parent=76 // pred_fallthru
            _
          // Predicated region
          $region82: #{lstm_model_v2_forward.8} parent=76 // pred_check
            %p375 = pneg %p371
          $region83: #{lstm_model_v2_forward.8} parent=76 // pred_check_branch
            %377 = sbr.rel (%p375) target = $region85
          $region84: #{lstm_model_v2_forward.8} parent=76 // pred_region
            %s378 = sshllo.u32 0, 16
            loop: start=0, step=1, limit=1
            $region86: #{lstm_model_v2_forward.8} parent=84 // loop_pre_header
              _
            $region87: #{lstm_model_v2_forward.8} parent=84 // loop_header
              %s380 = sphi 0, %s384
              %p381 = scmp.ge.s32.totalorder %s380, 1
              %s385 = sphi %s3, %s3
              %s386 = sphi [#allocation4], [#allocation4]
            $region88: #{lstm_model_v2_forward.8} parent=84 // loop_header_branch
              %383 = sbr.rel (%p381) target = $region92
            $region89: #{lstm_model_v2_forward.8} parent=84 // loop_body
              %v387 = vld [vmem:[%s385] sm:%s378]
              %388 = vst [vmem:[%s386] sm:%s378] %v387
            $region90: #{lstm_model_v2_forward.8} parent=84 // loop_footer
              %s384 = sadd.s32 1, %s380
            $region91: #{lstm_model_v2_forward.8} parent=84 // loop_footer_branch
              %379 = sbr.rel target = $region87
            $region92: #{lstm_model_v2_forward.8} parent=84 // loop_exit
              _
          $region85: #{lstm_model_v2_forward.8} parent=76 // pred_fallthru
            _
          // Predicated region
          $region108: #{lstm_model_v2_forward.8} parent=76 // pred_check
            _
          $region109: #{lstm_model_v2_forward.8} parent=76 // pred_check_branch
            %412 = sbr.rel (0) target = $region111
          $region110: #{lstm_model_v2_forward.8} parent=76 // pred_region
            %413 = vsyncadd [#allocation5], 256
          $region111: #{lstm_model_v2_forward.8} parent=76 // pred_fallthru
            _
          %s414 = smul.u32 4, 4
          %s415 = smul.u32 %s414, 1
          %s416 = sshll.u32 %s415, 4
          %417 = dma.done [#allocation5], %s416
          %v418 = vld [vmem:[%s351] sm:$0xff]
          %v419 = vpack.c.bf16 %v418, %v418
          %vm420 = vcmask 257024
          %421 = vst.msk [vmem:[#allocation2] sm:$0xf] %vm420, %v419
          %v422 = vld [vmem:[%s355] sm:$0xff]
          %vm423 = vcmask 261120
          %424 = vst.msk [vmem:[#allocation3] sm:$0xff] %vm423, %v422
        $region77: #{lstm_model_v2_forward.8} parent=68 // pred_fallthru
          _
        %v425 = vld [vmem:[#allocation4] sm:$0xff]
        %v426 = vld [vmem:[#allocation4 + $0x8] sm:$0xff]
        %v427 = vld [vmem:[#allocation2] sm:$0xf]
        %v428 = vld [vmem:[#allocation3] sm:$0xff]
        %v429 = vld [vmem:[%s307] sm:$0xf]
        %v430 = vunpack.c.l.bf16 %v429
        %vm431 = vcmask 261120
        %v433 = vsel %vm431, %v427, 0
        %435 = vmatprep.subr.bf16.mxu0 0
        %436 = vmatpush1.bf16.msra.mxu0 %v425
        %437 = vmatprep.subr.bf16.mxu0 0
        %438 = vmatpush1.bf16.msra.mxu0 %v426
        %439 = vmatprep.subr.bf16.mxu0 0
        %440 = vmatpush1.bf16.msra.mxu0 0
        %441 = vmatprep.subr.bf16.mxu0 0
        %442 = vmatpush1.bf16.msra.mxu0 0
        %443 = vmatprep.subr.bf16.mxu0 0
        %444 = vmatpush1.bf16.msra.mxu0 0
        %445 = vmatprep.subr.bf16.mxu0 0
        %446 = vmatpush1.bf16.msra.mxu0 0
        %447 = vmatprep.subr.bf16.mxu0 0
        %448 = vmatpush1.bf16.msra.mxu0 0
        %449 = vmatprep.subr.bf16.mxu0 0
        %450 = vmatpush1.bf16.msra.mxu0 0
        %451 = vmatprep.subr.bf16.mxu0 0
        %452 = vmatpush1.bf16.msra.mxu0 0
        %453 = vmatprep.subr.bf16.mxu0 0
        %454 = vmatpush1.bf16.msra.mxu0 0
        %455 = vmatprep.subr.bf16.mxu0 0
        %456 = vmatpush1.bf16.msra.mxu0 0
        %457 = vmatprep.subr.bf16.mxu0 0
        %458 = vmatpush1.bf16.msra.mxu0 0
        %459 = vmatprep.subr.bf16.mxu0 0
        %460 = vmatpush1.bf16.msra.mxu0 0
        %461 = vmatprep.subr.bf16.mxu0 0
        %462 = vmatpush1.bf16.msra.mxu0 0
        %463 = vmatprep.subr.bf16.mxu0 0
        %464 = vmatpush1.bf16.msra.mxu0 0
        %465 = vmatprep.subr.bf16.mxu0 0
        %466 = vmatpush1.bf16.msra.mxu0 0
        %467 = vmatprep.mubr.bf16.mxu0 0
        %468 = vmatmul.mubr.bf16.gmra.mrb[0].mxu0 %v433
        %v469 = vpop.f32.mrb[0].mxu0
        %v470 = vadd.f32 0.0, %v469
        %v471 = vpop.f32.mrb[0].mxu0
        %v472 = vpop.f32.mrb[0].mxu0
        %v473 = vpop.f32.mrb[0].mxu0
        %474 = vdwg.mxu0
        %v475 = vadd.f32 %v430, %v470
        %v476 = vmul.f32 %v475, 0.5
        %v477 = vtanh.pop %v476
        %v478 = vmul.f32 %v477, 0.5
        %v479 = vadd.f32 %v478, 0.5
        %v480 = vtanh.pop %v475
        %482 = vrot.lane.b32.xlu0 %v428, 32
        %v483 = vpop.permute.xlu0 %482
        %v485 = vmul.f32 %v479, %v483
        %487 = vrot.lane.b32.xlu0 %v480, 32
        %v488 = vpop.permute.xlu0 %487
        %v490 = vmul.f32 %v479, %v488
        %492 = vrot.lane.b32.xlu0 %v490, 32
        %v493 = vpop.permute.xlu0 %492
        %v495 = vadd.f32 %v485, %v493
        %v496 = vtanh.pop %v495
        %498 = vrot.lane.b32.xlu0 %v496, 32
        %v499 = vpop.permute.xlu0 %498
        %v501 = vmul.f32 %v479, %v499
        %v502 = vpack.c.bf16 %v501, %v501
        %v504 = vunpack.c.l.b16 %v502
        %v505 = vpack.c.b16 %v504, %v504
        %506 = vrot.lane.b32.xlu0 %v505, 64
        %v507 = vpop.permute.xlu0 %506
        %vm509 = vcmask 257024
        %510 = vst.msk [vmem:[#allocation2] sm:$0xf] %vm509, %v507
        %512 = vrot.lane.b32.xlu0 %v495, 96
        %v513 = vpop.permute.xlu0 %512
        %515 = vst.msk [vmem:[#allocation3] sm:$0xff] %vm431, %v513
        %516 = vst.msk [vmem:[%s334] sm:$0xf] %vm509, %v507
        %v517 = vld [vmem:[#allocation2] sm:$0xf]
        %v518 = vld [vmem:[#allocation3] sm:$0xff]
        %s519 = scalar_lea.vmem %s307, 4 [#allocation6]
        %v520 = vld [vmem:[%s519] sm:$0xf]
        %v521 = vunpack.c.l.bf16 %v520
        %v523 = vsel %vm431, %v517, 0
        %525 = vmatprep.subr.bf16.mxu0 0
        %526 = vmatpush1.bf16.msra.mxu0 %v425
        %527 = vmatprep.subr.bf16.mxu0 0
        %528 = vmatpush1.bf16.msra.mxu0 %v426
        %529 = vmatprep.subr.bf16.mxu0 0
        %530 = vmatpush1.bf16.msra.mxu0 0
        %531 = vmatprep.subr.bf16.mxu0 0
        %532 = vmatpush1.bf16.msra.mxu0 0
        %533 = vmatprep.subr.bf16.mxu0 0
        %534 = vmatpush1.bf16.msra.mxu0 0
        %535 = vmatprep.subr.bf16.mxu0 0
        %536 = vmatpush1.bf16.msra.mxu0 0
        %537 = vmatprep.subr.bf16.mxu0 0
        %538 = vmatpush1.bf16.msra.mxu0 0
        %539 = vmatprep.subr.bf16.mxu0 0
        %540 = vmatpush1.bf16.msra.mxu0 0
        %541 = vmatprep.subr.bf16.mxu0 0
        %542 = vmatpush1.bf16.msra.mxu0 0
        %543 = vmatprep.subr.bf16.mxu0 0
        %544 = vmatpush1.bf16.msra.mxu0 0
        %545 = vmatprep.subr.bf16.mxu0 0
        %546 = vmatpush1.bf16.msra.mxu0 0
        %547 = vmatprep.subr.bf16.mxu0 0
        %548 = vmatpush1.bf16.msra.mxu0 0
        %549 = vmatprep.subr.bf16.mxu0 0
        %550 = vmatpush1.bf16.msra.mxu0 0
        %551 = vmatprep.subr.bf16.mxu0 0
        %552 = vmatpush1.bf16.msra.mxu0 0
        %553 = vmatprep.subr.bf16.mxu0 0
        %554 = vmatpush1.bf16.msra.mxu0 0
        %555 = vmatprep.subr.bf16.mxu0 0
        %556 = vmatpush1.bf16.msra.mxu0 0
        %557 = vmatprep.mubr.bf16.mxu0 0
        %558 = vmatmul.mubr.bf16.gmra.mrb[0].mxu0 %v523
        %v559 = vpop.f32.mrb[0].mxu0
        %v560 = vadd.f32 0.0, %v559
        %v561 = vpop.f32.mrb[0].mxu0
        %v562 = vpop.f32.mrb[0].mxu0
        %v563 = vpop.f32.mrb[0].mxu0
        %564 = vdwg.mxu0
        %v565 = vadd.f32 %v521, %v560
        %v566 = vmul.f32 %v565, 0.5
        %v567 = vtanh.pop %v566
        %v568 = vmul.f32 %v567, 0.5
        %v569 = vadd.f32 %v568, 0.5
        %v570 = vtanh.pop %v565
        %572 = vrot.lane.b32.xlu0 %v518, 32
        %v573 = vpop.permute.xlu0 %572
        %v575 = vmul.f32 %v569, %v573
        %577 = vrot.lane.b32.xlu0 %v570, 32
        %v578 = vpop.permute.xlu0 %577
        %v580 = vmul.f32 %v569, %v578
        %582 = vrot.lane.b32.xlu0 %v580, 32
        %v583 = vpop.permute.xlu0 %582
        %v585 = vadd.f32 %v575, %v583
        %v586 = vtanh.pop %v585
        %588 = vrot.lane.b32.xlu0 %v586, 32
        %v589 = vpop.permute.xlu0 %588
        %v591 = vmul.f32 %v569, %v589
        %v592 = vpack.c.bf16 %v591, %v591
        %v594 = vunpack.c.l.b16 %v592
        %v595 = vpack.c.b16 %v594, %v594
        %596 = vrot.lane.b32.xlu0 %v595, 64
        %v597 = vpop.permute.xlu0 %596
        %599 = vst.msk [vmem:[#allocation2] sm:$0xf] %vm509, %v597
        %601 = vrot.lane.b32.xlu0 %v585, 96
        %v602 = vpop.permute.xlu0 %601
        %604 = vst.msk [vmem:[#allocation3] sm:$0xff] %vm431, %v602
        %s605 = scalar_lea.vmem %s334, 4 [#allocation7]
        %606 = vst.msk [vmem:[%s605] sm:$0xf] %vm509, %v597
        %v607 = vld [vmem:[#allocation2] sm:$0xf]
        %v608 = vld [vmem:[#allocation3] sm:$0xff]
        %s609 = scalar_lea.vmem %s307, 8 [#allocation6]
        %v610 = vld [vmem:[%s609] sm:$0xf]
        %v611 = vunpack.c.l.bf16 %v610
        %v613 = vsel %vm431, %v607, 0
        %615 = vmatprep.subr.bf16.mxu0 0
        %616 = vmatpush1.bf16.msra.mxu0 %v425
        %617 = vmatprep.subr.bf16.mxu0 0
        %618 = vmatpush1.bf16.msra.mxu0 %v426
        %619 = vmatprep.subr.bf16.mxu0 0
        %620 = vmatpush1.bf16.msra.mxu0 0
        %621 = vmatprep.subr.bf16.mxu0 0
        %622 = vmatpush1.bf16.msra.mxu0 0
        %623 = vmatprep.subr.bf16.mxu0 0
        %624 = vmatpush1.bf16.msra.mxu0 0
        %625 = vmatprep.subr.bf16.mxu0 0
        %626 = vmatpush1.bf16.msra.mxu0 0
        %627 = vmatprep.subr.bf16.mxu0 0
        %628 = vmatpush1.bf16.msra.mxu0 0
        %629 = vmatprep.subr.bf16.mxu0 0
        %630 = vmatpush1.bf16.msra.mxu0 0
        %631 = vmatprep.subr.bf16.mxu0 0
        %632 = vmatpush1.bf16.msra.mxu0 0
        %633 = vmatprep.subr.bf16.mxu0 0
        %634 = vmatpush1.bf16.msra.mxu0 0
        %635 = vmatprep.subr.bf16.mxu0 0
        %636 = vmatpush1.bf16.msra.mxu0 0
        %637 = vmatprep.subr.bf16.mxu0 0
        %638 = vmatpush1.bf16.msra.mxu0 0
        %639 = vmatprep.subr.bf16.mxu0 0
        %640 = vmatpush1.bf16.msra.mxu0 0
        %641 = vmatprep.subr.bf16.mxu0 0
        %642 = vmatpush1.bf16.msra.mxu0 0
        %643 = vmatprep.subr.bf16.mxu0 0
        %644 = vmatpush1.bf16.msra.mxu0 0
        %645 = vmatprep.subr.bf16.mxu0 0
        %646 = vmatpush1.bf16.msra.mxu0 0
        %647 = vmatprep.mubr.bf16.mxu0 0
        %648 = vmatmul.mubr.bf16.gmra.mrb[0].mxu0 %v613
        %v649 = vpop.f32.mrb[0].mxu0
        %v650 = vadd.f32 0.0, %v649
        %v651 = vpop.f32.mrb[0].mxu0
        %v652 = vpop.f32.mrb[0].mxu0
        %v653 = vpop.f32.mrb[0].mxu0
        %654 = vdwg.mxu0
        %v655 = vadd.f32 %v611, %v650
        %v656 = vmul.f32 %v655, 0.5
        %v657 = vtanh.pop %v656
        %v658 = vmul.f32 %v657, 0.5
        %v659 = vadd.f32 %v658, 0.5
        %v660 = vtanh.pop %v655
        %662 = vrot.lane.b32.xlu0 %v608, 32
        %v663 = vpop.permute.xlu0 %662
        %v665 = vmul.f32 %v659, %v663
        %667 = vrot.lane.b32.xlu0 %v660, 32
        %v668 = vpop.permute.xlu0 %667
        %v670 = vmul.f32 %v659, %v668
        %672 = vrot.lane.b32.xlu0 %v670, 32
        %v673 = vpop.permute.xlu0 %672
        %v675 = vadd.f32 %v665, %v673
        %v676 = vtanh.pop %v675
        %678 = vrot.lane.b32.xlu0 %v676, 32
        %v679 = vpop.permute.xlu0 %678
        %v681 = vmul.f32 %v659, %v679
        %v682 = vpack.c.bf16 %v681, %v681
        %v684 = vunpack.c.l.b16 %v682
        %v685 = vpack.c.b16 %v684, %v684
        %686 = vrot.lane.b32.xlu0 %v685, 64
        %v687 = vpop.permute.xlu0 %686
        %689 = vst.msk [vmem:[#allocation2] sm:$0xf] %vm509, %v687
        %691 = vrot.lane.b32.xlu0 %v675, 96
        %v692 = vpop.permute.xlu0 %691
        %694 = vst.msk [vmem:[#allocation3] sm:$0xff] %vm431, %v692
        %s695 = scalar_lea.vmem %s334, 8 [#allocation7]
        %696 = vst.msk [vmem:[%s695] sm:$0xf] %vm509, %v687
        %v697 = vld [vmem:[#allocation2] sm:$0xf]
        %v698 = vld [vmem:[#allocation3] sm:$0xff]
        %s699 = scalar_lea.vmem %s307, 12 [#allocation6]
        %v700 = vld [vmem:[%s699] sm:$0xf]
        %v701 = vunpack.c.l.bf16 %v700
        %v703 = vsel %vm431, %v697, 0
        %705 = vmatprep.subr.bf16.mxu0 0
        %706 = vmatpush1.bf16.msra.mxu0 %v425
        %707 = vmatprep.subr.bf16.mxu0 0
        %708 = vmatpush1.bf16.msra.mxu0 %v426
        %709 = vmatprep.subr.bf16.mxu0 0
        %710 = vmatpush1.bf16.msra.mxu0 0
        %711 = vmatprep.subr.bf16.mxu0 0
        %712 = vmatpush1.bf16.msra.mxu0 0
        %713 = vmatprep.subr.bf16.mxu0 0
        %714 = vmatpush1.bf16.msra.mxu0 0
        %715 = vmatprep.subr.bf16.mxu0 0
        %716 = vmatpush1.bf16.msra.mxu0 0
        %717 = vmatprep.subr.bf16.mxu0 0
        %718 = vmatpush1.bf16.msra.mxu0 0
        %719 = vmatprep.subr.bf16.mxu0 0
        %720 = vmatpush1.bf16.msra.mxu0 0
        %721 = vmatprep.subr.bf16.mxu0 0
        %722 = vmatpush1.bf16.msra.mxu0 0
        %723 = vmatprep.subr.bf16.mxu0 0
        %724 = vmatpush1.bf16.msra.mxu0 0
        %725 = vmatprep.subr.bf16.mxu0 0
        %726 = vmatpush1.bf16.msra.mxu0 0
        %727 = vmatprep.subr.bf16.mxu0 0
        %728 = vmatpush1.bf16.msra.mxu0 0
        %729 = vmatprep.subr.bf16.mxu0 0
        %730 = vmatpush1.bf16.msra.mxu0 0
        %731 = vmatprep.subr.bf16.mxu0 0
        %732 = vmatpush1.bf16.msra.mxu0 0
        %733 = vmatprep.subr.bf16.mxu0 0
        %734 = vmatpush1.bf16.msra.mxu0 0
        %735 = vmatprep.subr.bf16.mxu0 0
        %736 = vmatpush1.bf16.msra.mxu0 0
        %737 = vmatprep.mubr.bf16.mxu0 0
        %738 = vmatmul.mubr.bf16.gmra.mrb[0].mxu0 %v703
        %v739 = vpop.f32.mrb[0].mxu0
        %v740 = vadd.f32 0.0, %v739
        %v741 = vpop.f32.mrb[0].mxu0
        %v742 = vpop.f32.mrb[0].mxu0
        %v743 = vpop.f32.mrb[0].mxu0
        %744 = vdwg.mxu0
        %v745 = vadd.f32 %v701, %v740
        %v746 = vmul.f32 %v745, 0.5
        %v747 = vtanh.pop %v746
        %v748 = vmul.f32 %v747, 0.5
        %v749 = vadd.f32 %v748, 0.5
        %v750 = vtanh.pop %v745
        %752 = vrot.lane.b32.xlu0 %v698, 32
        %v753 = vpop.permute.xlu0 %752
        %v755 = vmul.f32 %v749, %v753
        %757 = vrot.lane.b32.xlu0 %v750, 32
        %v758 = vpop.permute.xlu0 %757
        %v760 = vmul.f32 %v749, %v758
        %762 = vrot.lane.b32.xlu0 %v760, 32
        %v763 = vpop.permute.xlu0 %762
        %v765 = vadd.f32 %v755, %v763
        %v766 = vtanh.pop %v765
        %768 = vrot.lane.b32.xlu0 %v766, 32
        %v769 = vpop.permute.xlu0 %768
        %v771 = vmul.f32 %v749, %v769
        %v772 = vpack.c.bf16 %v771, %v771
        %v774 = vunpack.c.l.b16 %v772
        %v775 = vpack.c.b16 %v774, %v774
        %776 = vrot.lane.b32.xlu0 %v775, 64
        %v777 = vpop.permute.xlu0 %776
        %779 = vst.msk [vmem:[#allocation2] sm:$0xf] %vm509, %v777
        %781 = vrot.lane.b32.xlu0 %v765, 96
        %v782 = vpop.permute.xlu0 %781
        %784 = vst.msk [vmem:[#allocation3] sm:$0xff] %vm431, %v782
        %s785 = scalar_lea.vmem %s334, 12 [#allocation7]
        %786 = vst.msk [vmem:[%s785] sm:$0xf] %vm509, %v777
        %v787 = vld [vmem:[#allocation2] sm:$0xf]
        %v788 = vld [vmem:[#allocation3] sm:$0xff]
        %s789 = scalar_lea.vmem %s307, 16 [#allocation6]
        %v790 = vld [vmem:[%s789] sm:$0xf]
        %v791 = vunpack.c.l.bf16 %v790
        %v793 = vsel %vm431, %v787, 0
        %795 = vmatprep.subr.bf16.mxu0 0
        %796 = vmatpush1.bf16.msra.mxu0 %v425
        %797 = vmatprep.subr.bf16.mxu0 0
        %798 = vmatpush1.bf16.msra.mxu0 %v426
        %799 = vmatprep.subr.bf16.mxu0 0
        %800 = vmatpush1.bf16.msra.mxu0 0
        %801 = vmatprep.subr.bf16.mxu0 0
        %802 = vmatpush1.bf16.msra.mxu0 0
        %803 = vmatprep.subr.bf16.mxu0 0
        %804 = vmatpush1.bf16.msra.mxu0 0
        %805 = vmatprep.subr.bf16.mxu0 0
        %806 = vmatpush1.bf16.msra.mxu0 0
        %807 = vmatprep.subr.bf16.mxu0 0
        %808 = vmatpush1.bf16.msra.mxu0 0
        %809 = vmatprep.subr.bf16.mxu0 0
        %810 = vmatpush1.bf16.msra.mxu0 0
        %811 = vmatprep.subr.bf16.mxu0 0
        %812 = vmatpush1.bf16.msra.mxu0 0
        %813 = vmatprep.subr.bf16.mxu0 0
        %814 = vmatpush1.bf16.msra.mxu0 0
        %815 = vmatprep.subr.bf16.mxu0 0
        %816 = vmatpush1.bf16.msra.mxu0 0
        %817 = vmatprep.subr.bf16.mxu0 0
        %818 = vmatpush1.bf16.msra.mxu0 0
        %819 = vmatprep.subr.bf16.mxu0 0
        %820 = vmatpush1.bf16.msra.mxu0 0
        %821 = vmatprep.subr.bf16.mxu0 0
        %822 = vmatpush1.bf16.msra.mxu0 0
        %823 = vmatprep.subr.bf16.mxu0 0
        %824 = vmatpush1.bf16.msra.mxu0 0
        %825 = vmatprep.subr.bf16.mxu0 0
        %826 = vmatpush1.bf16.msra.mxu0 0
        %827 = vmatprep.mubr.bf16.mxu0 0
        %828 = vmatmul.mubr.bf16.gmra.mrb[0].mxu0 %v793
        %v829 = vpop.f32.mrb[0].mxu0
        %v830 = vadd.f32 0.0, %v829
        %v831 = vpop.f32.mrb[0].mxu0
        %v832 = vpop.f32.mrb[0].mxu0
        %v833 = vpop.f32.mrb[0].mxu0
        %834 = vdwg.mxu0
        %v835 = vadd.f32 %v791, %v830
        %v836 = vmul.f32 %v835, 0.5
        %v837 = vtanh.pop %v836
        %v838 = vmul.f32 %v837, 0.5
        %v839 = vadd.f32 %v838, 0.5
        %v840 = vtanh.pop %v835
        %842 = vrot.lane.b32.xlu0 %v788, 32
        %v843 = vpop.permute.xlu0 %842
        %v845 = vmul.f32 %v839, %v843
        %847 = vrot.lane.b32.xlu0 %v840, 32
        %v848 = vpop.permute.xlu0 %847
        %v850 = vmul.f32 %v839, %v848
        %852 = vrot.lane.b32.xlu0 %v850, 32
        %v853 = vpop.permute.xlu0 %852
        %v855 = vadd.f32 %v845, %v853
        %v856 = vtanh.pop %v855
        %858 = vrot.lane.b32.xlu0 %v856, 32
        %v859 = vpop.permute.xlu0 %858
        %v861 = vmul.f32 %v839, %v859
        %v862 = vpack.c.bf16 %v861, %v861
        %v864 = vunpack.c.l.b16 %v862
        %v865 = vpack.c.b16 %v864, %v864
        %866 = vrot.lane.b32.xlu0 %v865, 64
        %v867 = vpop.permute.xlu0 %866
        %869 = vst.msk [vmem:[#allocation2] sm:$0xf] %vm509, %v867
        %871 = vrot.lane.b32.xlu0 %v855, 96
        %v872 = vpop.permute.xlu0 %871
        %874 = vst.msk [vmem:[#allocation3] sm:$0xff] %vm431, %v872
        %s875 = scalar_lea.vmem %s334, 16 [#allocation7]
        %876 = vst.msk [vmem:[%s875] sm:$0xf] %vm509, %v867
        %v877 = vld [vmem:[#allocation2] sm:$0xf]
        %v878 = vld [vmem:[#allocation3] sm:$0xff]
        %s879 = scalar_lea.vmem %s307, 20 [#allocation6]
        %v880 = vld [vmem:[%s879] sm:$0xf]
        %v881 = vunpack.c.l.bf16 %v880
        %v883 = vsel %vm431, %v877, 0
        %885 = vmatprep.subr.bf16.mxu0 0
        %886 = vmatpush1.bf16.msra.mxu0 %v425
        %887 = vmatprep.subr.bf16.mxu0 0
        %888 = vmatpush1.bf16.msra.mxu0 %v426
        %889 = vmatprep.subr.bf16.mxu0 0
        %890 = vmatpush1.bf16.msra.mxu0 0
        %891 = vmatprep.subr.bf16.mxu0 0
        %892 = vmatpush1.bf16.msra.mxu0 0
        %893 = vmatprep.subr.bf16.mxu0 0
        %894 = vmatpush1.bf16.msra.mxu0 0
        %895 = vmatprep.subr.bf16.mxu0 0
        %896 = vmatpush1.bf16.msra.mxu0 0
        %897 = vmatprep.subr.bf16.mxu0 0
        %898 = vmatpush1.bf16.msra.mxu0 0
        %899 = vmatprep.subr.bf16.mxu0 0
        %900 = vmatpush1.bf16.msra.mxu0 0
        %901 = vmatprep.subr.bf16.mxu0 0
        %902 = vmatpush1.bf16.msra.mxu0 0
        %903 = vmatprep.subr.bf16.mxu0 0
        %904 = vmatpush1.bf16.msra.mxu0 0
        %905 = vmatprep.subr.bf16.mxu0 0
        %906 = vmatpush1.bf16.msra.mxu0 0
        %907 = vmatprep.subr.bf16.mxu0 0
        %908 = vmatpush1.bf16.msra.mxu0 0
        %909 = vmatprep.subr.bf16.mxu0 0
        %910 = vmatpush1.bf16.msra.mxu0 0
        %911 = vmatprep.subr.bf16.mxu0 0
        %912 = vmatpush1.bf16.msra.mxu0 0
        %913 = vmatprep.subr.bf16.mxu0 0
        %914 = vmatpush1.bf16.msra.mxu0 0
        %915 = vmatprep.subr.bf16.mxu0 0
        %916 = vmatpush1.bf16.msra.mxu0 0
        %917 = vmatprep.mubr.bf16.mxu0 0
        %918 = vmatmul.mubr.bf16.gmra.mrb[0].mxu0 %v883
        %v919 = vpop.f32.mrb[0].mxu0
        %v920 = vadd.f32 0.0, %v919
        %v921 = vpop.f32.mrb[0].mxu0
        %v922 = vpop.f32.mrb[0].mxu0
        %v923 = vpop.f32.mrb[0].mxu0
        %924 = vdwg.mxu0
        %v925 = vadd.f32 %v881, %v920
        %v926 = vmul.f32 %v925, 0.5
        %v927 = vtanh.pop %v926
        %v928 = vmul.f32 %v927, 0.5
        %v929 = vadd.f32 %v928, 0.5
        %v930 = vtanh.pop %v925
        %932 = vrot.lane.b32.xlu0 %v878, 32
        %v933 = vpop.permute.xlu0 %932
        %v935 = vmul.f32 %v929, %v933
        %937 = vrot.lane.b32.xlu0 %v930, 32
        %v938 = vpop.permute.xlu0 %937
        %v940 = vmul.f32 %v929, %v938
        %942 = vrot.lane.b32.xlu0 %v940, 32
        %v943 = vpop.permute.xlu0 %942
        %v945 = vadd.f32 %v935, %v943
        %v946 = vtanh.pop %v945
        %948 = vrot.lane.b32.xlu0 %v946, 32
        %v949 = vpop.permute.xlu0 %948
        %v951 = vmul.f32 %v929, %v949
        %v952 = vpack.c.bf16 %v951, %v951
        %v954 = vunpack.c.l.b16 %v952
        %v955 = vpack.c.b16 %v954, %v954
        %956 = vrot.lane.b32.xlu0 %v955, 64
        %v957 = vpop.permute.xlu0 %956
        %959 = vst.msk [vmem:[#allocation2] sm:$0xf] %vm509, %v957
        %961 = vrot.lane.b32.xlu0 %v945, 96
        %v962 = vpop.permute.xlu0 %961
        %964 = vst.msk [vmem:[#allocation3] sm:$0xff] %vm431, %v962
        %s965 = scalar_lea.vmem %s334, 20 [#allocation7]
        %966 = vst.msk [vmem:[%s965] sm:$0xf] %vm509, %v957
        %v967 = vld [vmem:[#allocation2] sm:$0xf]
        %v968 = vld [vmem:[#allocation3] sm:$0xff]
        %s969 = scalar_lea.vmem %s307, 24 [#allocation6]
        %v970 = vld [vmem:[%s969] sm:$0xf]
        %v971 = vunpack.c.l.bf16 %v970
        %v973 = vsel %vm431, %v967, 0
        %975 = vmatprep.subr.bf16.mxu0 0
        %976 = vmatpush1.bf16.msra.mxu0 %v425
        %977 = vmatprep.subr.bf16.mxu0 0
        %978 = vmatpush1.bf16.msra.mxu0 %v426
        %979 = vmatprep.subr.bf16.mxu0 0
        %980 = vmatpush1.bf16.msra.mxu0 0
        %981 = vmatprep.subr.bf16.mxu0 0
        %982 = vmatpush1.bf16.msra.mxu0 0
        %983 = vmatprep.subr.bf16.mxu0 0
        %984 = vmatpush1.bf16.msra.mxu0 0
        %985 = vmatprep.subr.bf16.mxu0 0
        %986 = vmatpush1.bf16.msra.mxu0 0
        %987 = vmatprep.subr.bf16.mxu0 0
        %988 = vmatpush1.bf16.msra.mxu0 0
        %989 = vmatprep.subr.bf16.mxu0 0
        %990 = vmatpush1.bf16.msra.mxu0 0
        %991 = vmatprep.subr.bf16.mxu0 0
        %992 = vmatpush1.bf16.msra.mxu0 0
        %993 = vmatprep.subr.bf16.mxu0 0
        %994 = vmatpush1.bf16.msra.mxu0 0
        %995 = vmatprep.subr.bf16.mxu0 0
        %996 = vmatpush1.bf16.msra.mxu0 0
        %997 = vmatprep.subr.bf16.mxu0 0
        %998 = vmatpush1.bf16.msra.mxu0 0
        %999 = vmatprep.subr.bf16.mxu0 0
        %1000 = vmatpush1.bf16.msra.mxu0 0
        %1001 = vmatprep.subr.bf16.mxu0 0
        %1002 = vmatpush1.bf16.msra.mxu0 0
        %1003 = vmatprep.subr.bf16.mxu0 0
        %1004 = vmatpush1.bf16.msra.mxu0 0
        %1005 = vmatprep.subr.bf16.mxu0 0
        %1006 = vmatpush1.bf16.msra.mxu0 0
        %1007 = vmatprep.mubr.bf16.mxu0 0
        %1008 = vmatmul.mubr.bf16.gmra.mrb[0].mxu0 %v973
        %v1009 = vpop.f32.mrb[0].mxu0
        %v1010 = vadd.f32 0.0, %v1009
        %v1011 = vpop.f32.mrb[0].mxu0
        %v1012 = vpop.f32.mrb[0].mxu0
        %v1013 = vpop.f32.mrb[0].mxu0
        %1014 = vdwg.mxu0
        %v1015 = vadd.f32 %v971, %v1010
        %v1016 = vmul.f32 %v1015, 0.5
        %v1017 = vtanh.pop %v1016
        %v1018 = vmul.f32 %v1017, 0.5
        %v1019 = vadd.f32 %v1018, 0.5
        %v1020 = vtanh.pop %v1015
        %1022 = vrot.lane.b32.xlu0 %v968, 32
        %v1023 = vpop.permute.xlu0 %1022
        %v1025 = vmul.f32 %v1019, %v1023
        %1027 = vrot.lane.b32.xlu0 %v1020, 32
        %v1028 = vpop.permute.xlu0 %1027
        %v1030 = vmul.f32 %v1019, %v1028
        %1032 = vrot.lane.b32.xlu0 %v1030, 32
        %v1033 = vpop.permute.xlu0 %1032
        %v1035 = vadd.f32 %v1025, %v1033
        %v1036 = vtanh.pop %v1035
        %1038 = vrot.lane.b32.xlu0 %v1036, 32
        %v1039 = vpop.permute.xlu0 %1038
        %v1041 = vmul.f32 %v1019, %v1039
        %v1042 = vpack.c.bf16 %v1041, %v1041
        %v1044 = vunpack.c.l.b16 %v1042
        %v1045 = vpack.c.b16 %v1044, %v1044
        %1046 = vrot.lane.b32.xlu0 %v1045, 64
        %v1047 = vpop.permute.xlu0 %1046
        %1049 = vst.msk [vmem:[#allocation2] sm:$0xf] %vm509, %v1047
        %1051 = vrot.lane.b32.xlu0 %v1035, 96
        %v1052 = vpop.permute.xlu0 %1051
        %1054 = vst.msk [vmem:[#allocation3] sm:$0xff] %vm431, %v1052
        %s1055 = scalar_lea.vmem %s334, 24 [#allocation7]
        %1056 = vst.msk [vmem:[%s1055] sm:$0xf] %vm509, %v1047
        %v1057 = vld [vmem:[#allocation2] sm:$0xf]
        %v1058 = vld [vmem:[#allocation3] sm:$0xff]
        %s1059 = scalar_lea.vmem %s307, 28 [#allocation6]
        %v1060 = vld [vmem:[%s1059] sm:$0xf]
        %v1061 = vunpack.c.l.bf16 %v1060
        %v1063 = vsel %vm431, %v1057, 0
        %1065 = vmatprep.subr.bf16.mxu0 0
        %1066 = vmatpush1.bf16.msra.mxu0 %v425
        %1067 = vmatprep.subr.bf16.mxu0 0
        %1068 = vmatpush1.bf16.msra.mxu0 %v426
        %1069 = vmatprep.subr.bf16.mxu0 0
        %1070 = vmatpush1.bf16.msra.mxu0 0
        %1071 = vmatprep.subr.bf16.mxu0 0
        %1072 = vmatpush1.bf16.msra.mxu0 0
        %1073 = vmatprep.subr.bf16.mxu0 0
        %1074 = vmatpush1.bf16.msra.mxu0 0
        %1075 = vmatprep.subr.bf16.mxu0 0
        %1076 = vmatpush1.bf16.msra.mxu0 0
        %1077 = vmatprep.subr.bf16.mxu0 0
        %1078 = vmatpush1.bf16.msra.mxu0 0
        %1079 = vmatprep.subr.bf16.mxu0 0
        %1080 = vmatpush1.bf16.msra.mxu0 0
        %1081 = vmatprep.subr.bf16.mxu0 0
        %1082 = vmatpush1.bf16.msra.mxu0 0
        %1083 = vmatprep.subr.bf16.mxu0 0
        %1084 = vmatpush1.bf16.msra.mxu0 0
        %1085 = vmatprep.subr.bf16.mxu0 0
        %1086 = vmatpush1.bf16.msra.mxu0 0
        %1087 = vmatprep.subr.bf16.mxu0 0
        %1088 = vmatpush1.bf16.msra.mxu0 0
        %1089 = vmatprep.subr.bf16.mxu0 0
        %1090 = vmatpush1.bf16.msra.mxu0 0
        %1091 = vmatprep.subr.bf16.mxu0 0
        %1092 = vmatpush1.bf16.msra.mxu0 0
        %1093 = vmatprep.subr.bf16.mxu0 0
        %1094 = vmatpush1.bf16.msra.mxu0 0
        %1095 = vmatprep.subr.bf16.mxu0 0
        %1096 = vmatpush1.bf16.msra.mxu0 0
        %1097 = vmatprep.mubr.bf16.mxu0 0
        %1098 = vmatmul.mubr.bf16.gmra.mrb[0].mxu0 %v1063
        %v1099 = vpop.f32.mrb[0].mxu0
        %v1100 = vadd.f32 0.0, %v1099
        %v1101 = vpop.f32.mrb[0].mxu0
        %v1102 = vpop.f32.mrb[0].mxu0
        %v1103 = vpop.f32.mrb[0].mxu0
        %1104 = vdwg.mxu0
        %v1105 = vadd.f32 %v1061, %v1100
        %v1106 = vmul.f32 %v1105, 0.5
        %v1107 = vtanh.pop %v1106
        %v1108 = vmul.f32 %v1107, 0.5
        %v1109 = vadd.f32 %v1108, 0.5
        %v1110 = vtanh.pop %v1105
        %1112 = vrot.lane.b32.xlu0 %v1058, 32
        %v1113 = vpop.permute.xlu0 %1112
        %v1115 = vmul.f32 %v1109, %v1113
        %1117 = vrot.lane.b32.xlu0 %v1110, 32
        %v1118 = vpop.permute.xlu0 %1117
        %v1120 = vmul.f32 %v1109, %v1118
        %1122 = vrot.lane.b32.xlu0 %v1120, 32
        %v1123 = vpop.permute.xlu0 %1122
        %v1125 = vadd.f32 %v1115, %v1123
        %v1126 = vtanh.pop %v1125
        %1128 = vrot.lane.b32.xlu0 %v1126, 32
        %v1129 = vpop.permute.xlu0 %1128
        %v1131 = vmul.f32 %v1109, %v1129
        %v1132 = vpack.c.bf16 %v1131, %v1131
        %v1134 = vunpack.c.l.b16 %v1132
        %v1135 = vpack.c.b16 %v1134, %v1134
        %1136 = vrot.lane.b32.xlu0 %v1135, 64
        %v1137 = vpop.permute.xlu0 %1136
        %1139 = vst.msk [vmem:[#allocation2] sm:$0xf] %vm509, %v1137
        %1141 = vrot.lane.b32.xlu0 %v1125, 96
        %v1142 = vpop.permute.xlu0 %1141
        %1144 = vst.msk [vmem:[#allocation3] sm:$0xff] %vm431, %v1142
        %s1145 = scalar_lea.vmem %s334, 28 [#allocation7]
        %1146 = vst.msk [vmem:[%s1145] sm:$0xf] %vm509, %v1137
        // Predicated region
        $region112: #{lstm_model_v2_forward.8} parent=68 // pred_check
          %p1147 = pneg %p366
        $region113: #{lstm_model_v2_forward.8} parent=68 // pred_check_branch
          %1149 = sbr.rel (%p1147) target = $region115
        $region114: #{lstm_model_v2_forward.8} parent=68 // pred_region
          %v1150 = vld [vmem:[#allocation2] sm:$0xf]
          %v1151 = vunpack.c.l.bf16 %v1150
          %1152 = vst.msk [vmem:[%s360] sm:$0xff] %vm431, %v1151
          %v1153 = vld [vmem:[#allocation3] sm:$0xff]
          %1154 = vst.msk [vmem:[%s364] sm:$0xff] %vm431, %v1153
        $region115: #{lstm_model_v2_forward.8} parent=68 // pred_fallthru
          _
        %s1155 = sand.u32 %s120, 1
        %s1156 = sand.u32 %s120, 1
        %s1157 = smul.addr %s1156, 32
        %s1158 = scalar_lea.vmem [#allocation7], %s1157
        %p1159 = scmp.lt.s32.totalorder %s22, 1
        %s1160 = scalar_select %p1159, %s22, 1
        %s1161 = smul.addr %s1160, 8
        %s1162 = scalar_lea.vmem %s5, %s1161
        %p1163 = scmp.lt.s32.totalorder %s22, 1
        %s1164 = scalar_select %p1163, %s22, 1
        %s1165 = smul.addr %s1164, 8
        %s1166 = scalar_lea.vmem %s6, %s1165
        // Predicated region
        $region116: #{lstm_model_v2_forward.8} parent=68 // pred_check
          %p1167 = pneg %p130
        $region117: #{lstm_model_v2_forward.8} parent=68 // pred_check_branch
          %1169 = sbr.rel (%p1167) target = $region119
        $region118: #{lstm_model_v2_forward.8} parent=68 // pred_region
          %s1170 = smul.u32 8, %s23
          %s1171 = smul.addr %s1170, 2
          %s1172 = sadd.s32 %s22, %s1171
          %s1173 = smul.addr %s1172, 4
          %s1174 = scalar_lea.vmem %s4, %s1173
          // Predicated region
          $region120: #{lstm_model_v2_forward.8} parent=118 // pred_check
            _
          $region121: #{lstm_model_v2_forward.8} parent=118 // pred_check_branch
            %1176 = sbr.rel (0) target = $region123
          $region122: #{lstm_model_v2_forward.8} parent=118 // pred_region
            // Predicated region
            $region124: #{lstm_model_v2_forward.8} parent=122 // pred_check
              _
            $region125: #{lstm_model_v2_forward.8} parent=122 // pred_check_branch
              %1178 = sbr.rel target = $region127
            $region126: #{lstm_model_v2_forward.8} parent=122 // pred_region
              // Predicated region
              $region139: #{lstm_model_v2_forward.8} parent=126 // pred_check
                _
              $region140: #{lstm_model_v2_forward.8} parent=126 // pred_check_branch
                %1207 = sbr.rel (0) target = $region142
              $region141: #{lstm_model_v2_forward.8} parent=126 // pred_region
                loop: start=0, step=1, limit=1
                $region143: #{lstm_model_v2_forward.8} parent=141 // loop_pre_header
                  _
                $region144: #{lstm_model_v2_forward.8} parent=141 // loop_header
                  %s1209 = sphi 0, %s1213
                  %p1210 = scmp.ge.s32.totalorder %s1209, 1
                  %s1214 = sphi %s1158, %s1158
                  %s1215 = sphi %s1174, %s1174
                $region145: #{lstm_model_v2_forward.8} parent=141 // loop_header_branch
                  %1212 = sbr.rel (%p1210) target = $region149
                $region146: #{lstm_model_v2_forward.8} parent=141 // loop_body
                  _
                $region147: #{lstm_model_v2_forward.8} parent=141 // loop_footer
                  %s1213 = sadd.s32 1, %s1209
                $region148: #{lstm_model_v2_forward.8} parent=141 // loop_footer_branch
                  %1208 = sbr.rel target = $region144
                $region149: #{lstm_model_v2_forward.8} parent=141 // loop_exit
                  _
                loop: start=0, step=1, limit=1
                $region150: #{lstm_model_v2_forward.8} parent=141 // loop_pre_header
                  _
                $region151: #{lstm_model_v2_forward.8} parent=141 // loop_header
                  %s1218 = sphi 0, %s1222
                  %p1219 = scmp.ge.s32.totalorder %s1218, 1
                  %s1223 = sphi %s1158, %s1158
                  %s1224 = sphi %s1174, %s1174
                $region152: #{lstm_model_v2_forward.8} parent=141 // loop_header_branch
                  %1221 = sbr.rel (%p1219) target = $region156
                $region153: #{lstm_model_v2_forward.8} parent=141 // loop_body
                  %v1225 = vld [vmem:[%s1223] sm:$0xf]
                  %1226 = vst [vmem:[%s1224] sm:$0xf] %v1225
                  %v1227 = vld [vmem:[%s1223 + $0x4] sm:$0xf]
                  %1228 = vst [vmem:[%s1224 + $0x8] sm:$0xf] %v1227
                  %v1229 = vld [vmem:[%s1223 + $0x8] sm:$0xf]
                  %1230 = vst [vmem:[%s1224 + $0x10] sm:$0xf] %v1229
                  %v1231 = vld [vmem:[%s1223 + $0xc] sm:$0xf]
                  %1232 = vst [vmem:[%s1224 + $0x18] sm:$0xf] %v1231
                  %v1233 = vld [vmem:[%s1223 + $0x10] sm:$0xf]
                  %1234 = vst [vmem:[%s1224 + $0x20] sm:$0xf] %v1233
                  %v1235 = vld [vmem:[%s1223 + $0x14] sm:$0xf]
                  %1236 = vst [vmem:[%s1224 + $0x28] sm:$0xf] %v1235
                  %v1237 = vld [vmem:[%s1223 + $0x18] sm:$0xf]
                  %1238 = vst [vmem:[%s1224 + $0x30] sm:$0xf] %v1237
                  %v1239 = vld [vmem:[%s1223 + $0x1c] sm:$0xf]
                  %1240 = vst [vmem:[%s1224 + $0x38] sm:$0xf] %v1239
                $region154: #{lstm_model_v2_forward.8} parent=141 // loop_footer
                  %s1222 = sadd.s32 1, %s1218
                $region155: #{lstm_model_v2_forward.8} parent=141 // loop_footer_branch
                  %1217 = sbr.rel target = $region151
                $region156: #{lstm_model_v2_forward.8} parent=141 // loop_exit
                  _
              $region142: #{lstm_model_v2_forward.8} parent=126 // pred_fallthru
                _
            $region127: #{lstm_model_v2_forward.8} parent=122 // pred_fallthru
              _
            // Predicated region
            $region128: #{lstm_model_v2_forward.8} parent=122 // pred_check
              _
            $region129: #{lstm_model_v2_forward.8} parent=122 // pred_check_branch
              %1180 = sbr.rel (0) target = $region131
            $region130: #{lstm_model_v2_forward.8} parent=122 // pred_region
              loop: start=0, step=1, limit=1
              $region132: #{lstm_model_v2_forward.8} parent=130 // loop_pre_header
                _
              $region133: #{lstm_model_v2_forward.8} parent=130 // loop_header
                %s1183 = sphi 0, %s1187
                %p1184 = scmp.ge.s32.totalorder %s1183, 1
                %s1188 = sphi %s1158, %s1158
                %s1189 = sphi %s1174, %s1174
              $region134: #{lstm_model_v2_forward.8} parent=130 // loop_header_branch
                %1186 = sbr.rel (%p1184) target = $region138
              $region135: #{lstm_model_v2_forward.8} parent=130 // loop_body
                %v1190 = vld [vmem:[%s1188] sm:$0xf]
                %1191 = vst [vmem:[%s1189] sm:$0xf] %v1190
                %v1192 = vld [vmem:[%s1188 + $0x4] sm:$0xf]
                %1193 = vst [vmem:[%s1189 + $0x8] sm:$0xf] %v1192
                %v1194 = vld [vmem:[%s1188 + $0x8] sm:$0xf]
                %1195 = vst [vmem:[%s1189 + $0x10] sm:$0xf] %v1194
                %v1196 = vld [vmem:[%s1188 + $0xc] sm:$0xf]
                %1197 = vst [vmem:[%s1189 + $0x18] sm:$0xf] %v1196
                %v1198 = vld [vmem:[%s1188 + $0x10] sm:$0xf]
                %1199 = vst [vmem:[%s1189 + $0x20] sm:$0xf] %v1198
                %v1200 = vld [vmem:[%s1188 + $0x14] sm:$0xf]
                %1201 = vst [vmem:[%s1189 + $0x28] sm:$0xf] %v1200
                %v1202 = vld [vmem:[%s1188 + $0x18] sm:$0xf]
                %1203 = vst [vmem:[%s1189 + $0x30] sm:$0xf] %v1202
                %v1204 = vld [vmem:[%s1188 + $0x1c] sm:$0xf]
                %1205 = vst [vmem:[%s1189 + $0x38] sm:$0xf] %v1204
              $region136: #{lstm_model_v2_forward.8} parent=130 // loop_footer
                %s1187 = sadd.s32 1, %s1183
              $region137: #{lstm_model_v2_forward.8} parent=130 // loop_footer_branch
                %1182 = sbr.rel target = $region133
              $region138: #{lstm_model_v2_forward.8} parent=130 // loop_exit
                _
            $region131: #{lstm_model_v2_forward.8} parent=122 // pred_fallthru
              _
          $region123: #{lstm_model_v2_forward.8} parent=118 // pred_fallthru
            _
          %1241 = vnop
        $region119: #{lstm_model_v2_forward.8} parent=68 // pred_fallthru
          _
        // Predicated region
        $region157: #{lstm_model_v2_forward.8} parent=68 // pred_check
          %p1242 = pneg %p156
        $region158: #{lstm_model_v2_forward.8} parent=68 // pred_check_branch
          %1244 = sbr.rel (%p1242) target = $region160
        $region159: #{lstm_model_v2_forward.8} parent=68 // pred_region
          _
        $region160: #{lstm_model_v2_forward.8} parent=68 // pred_fallthru
          _
        // Predicated region
        $region161: #{lstm_model_v2_forward.8} parent=68 // pred_check
          %p1245 = pneg %p182
        $region162: #{lstm_model_v2_forward.8} parent=68 // pred_check_branch
          %1247 = sbr.rel (%p1245) target = $region164
        $region163: #{lstm_model_v2_forward.8} parent=68 // pred_region
          _
        $region164: #{lstm_model_v2_forward.8} parent=68 // pred_fallthru
          _
      $region69: #{lstm_model_v2_forward.8} parent=5 // pred_fallthru
        _
      %p1248 = scmp.le.s32.totalorder 2, %s13
      // Predicated region
      $region165: #{lstm_model_v2_forward.8} parent=5 // pred_check
        %p1249 = pneg %p1248
      $region166: #{lstm_model_v2_forward.8} parent=5 // pred_check_branch
        %1251 = sbr.rel (%p1249) target = $region168
      $region167: #{lstm_model_v2_forward.8} parent=5 // pred_region
        %s1252 = ssub.s32 %s13, 2
        // Predicated region
        $region169: #{lstm_model_v2_forward.8} parent=167 // pred_check
          %p1253 = pneg %p136
        $region170: #{lstm_model_v2_forward.8} parent=167 // pred_check_branch
          %1255 = sbr.rel (%p1253) target = $region172
        $region171: #{lstm_model_v2_forward.8} parent=167 // pred_region
          %s1256 = sand.u32 %s121, 1
          %s1257 = sand.u32 %s121, 1
          %s1258 = smul.addr %s1257, 32
          %s1259 = scalar_lea.vmem [#allocation7], %s1258
        $region172: #{lstm_model_v2_forward.8} parent=167 // pred_fallthru
          _
        // Predicated region
        $region173: #{lstm_model_v2_forward.8} parent=167 // pred_check
          %p1260 = pneg %p162
        $region174: #{lstm_model_v2_forward.8} parent=167 // pred_check_branch
          %1262 = sbr.rel (%p1260) target = $region176
        $region175: #{lstm_model_v2_forward.8} parent=167 // pred_region
          %p1263 = scmp.lt.s32.totalorder %s24, 1
          %s1264 = scalar_select %p1263, %s24, 1
          %s1265 = smul.addr %s1264, 8
          %s1266 = scalar_lea.vmem %s5, %s1265
        $region176: #{lstm_model_v2_forward.8} parent=167 // pred_fallthru
          _
        // Predicated region
        $region177: #{lstm_model_v2_forward.8} parent=167 // pred_check
          %p1267 = pneg %p188
        $region178: #{lstm_model_v2_forward.8} parent=167 // pred_check_branch
          %1269 = sbr.rel (%p1267) target = $region180
        $region179: #{lstm_model_v2_forward.8} parent=167 // pred_region
          %p1270 = scmp.lt.s32.totalorder %s24, 1
          %s1271 = scalar_select %p1270, %s24, 1
          %s1272 = smul.addr %s1271, 8
          %s1273 = scalar_lea.vmem %s6, %s1272
        $region180: #{lstm_model_v2_forward.8} parent=167 // pred_fallthru
          _
      $region168: #{lstm_model_v2_forward.8} parent=5 // pred_fallthru
        _
    $region6: #{lstm_model_v2_forward.8} parent=1 // loop_footer
      %s17 = sadd.s32 1, %s13
    $region7: #{lstm_model_v2_forward.8} parent=1 // loop_footer_branch
      %12 = sbr.rel target = $region3
    $region8: #{lstm_model_v2_forward.8} parent=1 // loop_exit
      _
  %1274 = vsyncmov [#allocation5]
  %s1275 = vpop.sfrf %1274
  %p1276 = scmp.eq.s32.totalorder %s1275, 0
  %p1277 = pneg %p1276
  %1279 = shalt.err (%p1277)

</llo_original>
